<compile_context>
chip_gen: v6e
topology: v6e:2x2x1
jax: 0.10.0
libtpu: 0.0.40
codegen_flags: <defaults>
</compile_context>

<pallas_src>
import functools

import jax
import jax.numpy as jnp
from jax.experimental import pallas as pl
from jax.experimental.pallas import tpu as pltpu


def _maxpool2x2_kernel(x_ref, sel_even_ref, sel_odd_ref, o_ref, *, w):
    # x_ref block: (T, 2*w) = [input row 2h | input row 2h+1] for each output row.
    x = x_ref[...].astype(jnp.float32)            # f32 math on all chips (v5e has no bf16 VPU)
    xh = jnp.maximum(x[:, :w], x[:, w:])          # (T, w): pooled over the H pair
    # Even / odd column extraction via 0/1 selection matrices on the MXU (exact).
    even = jnp.dot(xh, sel_even_ref[...],
                   preferred_element_type=jnp.float32,
                   precision=jax.lax.Precision.HIGHEST)
    odd = jnp.dot(xh, sel_odd_ref[...],
                  preferred_element_type=jnp.float32,
                  precision=jax.lax.Precision.HIGHEST)
    o_ref[...] = jnp.maximum(even, odd).astype(o_ref.dtype)


def maxpool2x2_pallas(x: jax.Array) -> jax.Array:
    """MaxPool2d(kernel_size=2, stride=2) over an NCHW tensor via a Pallas TPU kernel."""
    n, c, h, w = x.shape
    if h % 2 or w % 2:  # PyTorch floor behavior: drop trailing row/col
        h, w = (h // 2) * 2, (w // 2) * 2
        x = x[:, :, :h, :w]
    ho, wo = h // 2, w // 2
    dtype = x.dtype

    # Free (row-major) reshape: each row = two adjacent input rows of one output row.
    rows = n * c * ho
    x2 = x.reshape(rows, 2 * w)

    # 0/1 selection matrices for even/odd column de-interleave (stay VMEM-resident).
    # TODO(synk): for very wide W (>~2048) tile the W axis instead of keeping full-width
    # selection matrices resident.
    r_idx = jnp.arange(w, dtype=jnp.int32)[:, None]
    c_idx = jnp.arange(wo, dtype=jnp.int32)[None, :]
    sel_even = (r_idx == 2 * c_idx).astype(jnp.float32)
    sel_odd = (r_idx == 2 * c_idx + 1).astype(jnp.float32)

    # Row-block sizing: target ~2 MiB input block -> in 2x2MiB + out 2x0.5MiB (+sel)
    # fits comfortably inside the default scoped VMEM on v5e (16 MiB) / v6e / v7x (32 MiB)
    # while amortizing the ~0.35 us per-grid-step pipeline overhead.
    itemsize = jnp.dtype(dtype).itemsize
    row_align = 8 if itemsize >= 4 else (16 if itemsize == 2 else 32)
    bytes_per_row = 2 * w * itemsize
    target_bytes = 2 * 1024 * 1024
    t_rows = max(row_align, (target_bytes // bytes_per_row) // row_align * row_align)
    if t_rows >= rows:
        t_rows = rows          # tiny input: one block covering everything, grid of 1
        grid = (1,)
    else:
        grid = (pl.cdiv(rows, t_rows),)   # partial last block is write-masked by Pallas

    kernel = functools.partial(_maxpool2x2_kernel, w=w)

    out2 = pl.pallas_call(
        kernel,
        out_shape=jax.ShapeDtypeStruct((rows, wo), dtype),
        grid_spec=pltpu.PrefetchScalarGridSpec(
            num_scalar_prefetch=0,
            grid=grid,
            in_specs=[
                pl.BlockSpec((t_rows, 2 * w), lambda i: (i, 0)),
                pl.BlockSpec((w, wo), lambda i: (0, 0)),   # resident selection matrices
                pl.BlockSpec((w, wo), lambda i: (0, 0)),
            ],
            out_specs=pl.BlockSpec((t_rows, wo), lambda i: (i, 0)),
        ),
        compiler_params=pltpu.CompilerParams(
            dimension_semantics=("parallel",),   # lets v7x use both TensorCores
        ),
    )(x2, sel_even, sel_odd)

    # Free reshape back to NCHW output layout.
    return out2.reshape(n, c, ho, wo)


if __name__ == "__main__":
    key = jax.random.PRNGKey(0)
    # Activation-like input: (N, C, H, W) = (2, 4, 16, 16)
    x = jax.random.normal(key, (2, 4, 16, 16), dtype=jnp.float32)

    y = maxpool2x2_pallas(x)
    y = jax.block_until_ready(y)

    # Reference: 2x2 stride-2 max pooling.
    N, C, H, W = x.shape
    y_ref = jnp.max(x.reshape(N, C, H // 2, 2, W // 2, 2), axis=(3, 5))

    assert y.shape == (N, C, H // 2, W // 2)
    assert y.dtype == x.dtype
    assert jnp.allclose(y, y_ref, atol=1e-6, rtol=1e-6)

    print("KERNEL_OK")
</pallas_src>

<mosaic_0001>
module attributes {stable_mosaic.version = 11 : i64} {
  func.func @_maxpool2x2_kernel(%arg0: i32, %arg1: memref<64x32xf32, #tpu.memory_space<vmem>>, %arg2: memref<16x8xf32, #tpu.memory_space<vmem>>, %arg3: memref<16x8xf32, #tpu.memory_space<vmem>>, %arg4: memref<64x8xf32, #tpu.memory_space<vmem>>) attributes {dimension_semantics = [#tpu.dimension_semantics<parallel>], iteration_bounds = array<i64: 1>, scalar_prefetch = 0 : i64, scratch_operands = 0 : i64, tpu.core_type = #tpu.core_type<tc>, window_params = [{transform_indices = @transform_0, window_bounds = array<i64: 64, 32>}, {pipeline_mode = #tpu.pipeline_mode<synchronous>, transform_indices = @transform_1, window_bounds = array<i64: 16, 8>}, {pipeline_mode = #tpu.pipeline_mode<synchronous>, transform_indices = @transform_2, window_bounds = array<i64: 16, 8>}, {transform_indices = @transform_3, window_bounds = array<i64: 64, 8>}]} {
    %c0 = arith.constant 0 : index
    %c0_0 = arith.constant 0 : index
    %0 = vector.load %arg1[%c0, %c0_0] : memref<64x32xf32, #tpu.memory_space<vmem>>, vector<64x32xf32>
    %1 = vector.extract_strided_slice %0 {offsets = [0, 0], sizes = [64, 16], strides = [1, 1]} : vector<64x32xf32> to vector<64x16xf32>
    %2 = vector.extract_strided_slice %0 {offsets = [0, 16], sizes = [64, 16], strides = [1, 1]} : vector<64x32xf32> to vector<64x16xf32>
    %3 = arith.maximumf %1, %2 : vector<64x16xf32>
    %c0_1 = arith.constant 0 : index
    %c0_2 = arith.constant 0 : index
    %4 = vector.load %arg2[%c0_1, %c0_2] : memref<16x8xf32, #tpu.memory_space<vmem>>, vector<16x8xf32>
    %cst = arith.constant dense<0.000000e+00> : vector<64x8xf32>
    %5 = tpu.matmul %3, %4, %cst {dimension_numbers = #tpu.dot_dimension_numbers<[1], [0], [0], [1], [0, 0, 1, 1], [], []>, precision = #tpu.contract_precision<fp32>} : vector<64x16xf32>, vector<16x8xf32>, vector<64x8xf32> -> vector<64x8xf32>
    %c0_3 = arith.constant 0 : index
    %c0_4 = arith.constant 0 : index
    %6 = vector.load %arg3[%c0_3, %c0_4] : memref<16x8xf32, #tpu.memory_space<vmem>>, vector<16x8xf32>
    %cst_5 = arith.constant dense<0.000000e+00> : vector<64x8xf32>
    %7 = tpu.matmul %3, %6, %cst_5 {dimension_numbers = #tpu.dot_dimension_numbers<[1], [0], [0], [1], [0, 0, 1, 1], [], []>, precision = #tpu.contract_precision<fp32>} : vector<64x16xf32>, vector<16x8xf32>, vector<64x8xf32> -> vector<64x8xf32>
    %8 = arith.maximumf %5, %7 : vector<64x8xf32>
    %c0_6 = arith.constant 0 : index
    %c0_7 = arith.constant 0 : index
    %9 = vector.load %arg4[%c0_6, %c0_7] : memref<64x8xf32, #tpu.memory_space<vmem>>, vector<64x8xf32>
    tpu.vector_store %arg4[%c0_6, %c0_7], %8 {strides = array<i32>} : memref<64x8xf32, #tpu.memory_space<vmem>>, vector<64x8xf32>,
    return
  }
  func.func @transform_0(%arg0: i32) -> (i32, i32) {
    %c0_i32 = arith.constant 0 : i32
    %c0_i32_0 = arith.constant 0 : i32
    return %arg0, %c0_i32 : i32, i32
  }
  func.func @transform_1(%arg0: i32) -> (i32, i32) {
    %c0_i32 = arith.constant 0 : i32
    %c0_i32_0 = arith.constant 0 : i32
    %c0_i32_1 = arith.constant 0 : i32
    return %c0_i32, %c0_i32_0 : i32, i32
  }
  func.func @transform_2(%arg0: i32) -> (i32, i32) {
    %c0_i32 = arith.constant 0 : i32
    %c0_i32_0 = arith.constant 0 : i32
    %c0_i32_1 = arith.constant 0 : i32
    return %c0_i32, %c0_i32_0 : i32, i32
  }
  func.func @transform_3(%arg0: i32) -> (i32, i32) {
    %c0_i32 = arith.constant 0 : i32
    %c0_i32_0 = arith.constant 0 : i32
    return %arg0, %c0_i32 : i32, i32
  }
}

</mosaic_0001>

<llo_original>
// kernel: tpu_custom_call.1
$region0: #{tpu_custom_call.1}
  #allocation0 [shape = 'u32[]', space=smem, size = 0x4, offset = 0x4, fixed_abs, tag = 'smem constant byte address 0x4 - core index']
  #allocation1 [shape = 'u32[144,128]{1,0:T(1,128)}', space=vmem, size = 0x12000, scoped, tag = 'internal scratch']
  %s0 = inlined_call_operand.vmem [shape: f32[64,32], index: 0, kind: input, shape index: {}]
  %s1 = inlined_call_operand.vmem [shape: f32[16,8], index: 1, kind: input, shape index: {}]
  %s2 = inlined_call_operand.vmem [shape: f32[16,8], index: 2, kind: input, shape index: {}]
  %s3 = inlined_call_operand.vmem [shape: f32[64,8], index: 3, kind: output, shape index: {}]
  %s4 = sld [smem:[#allocation0]]
  $region22: #{tpu_custom_call.1} parent=0
    _
  %s6 = ssub.s32 1, %s4
  %s7 = scalar_select 0, %s6, %s4
  // Predicated region
  $region2: #{tpu_custom_call.1} parent=0 // pred_check
    _
  $region3: #{tpu_custom_call.1} parent=0 // pred_check_branch
    %9 = sbr.rel (0) target = $region5
  $region4: #{tpu_custom_call.1} parent=0 // pred_region
    _
  $region5: #{tpu_custom_call.1} parent=0 // pred_fallthru
    _
  // Predicated region
  $region6: #{tpu_custom_call.1} parent=0 // pred_check
    _
  $region7: #{tpu_custom_call.1} parent=0 // pred_check_branch
    %11 = sbr.rel (0) target = $region9
  $region8: #{tpu_custom_call.1} parent=0 // pred_region
    _
  $region9: #{tpu_custom_call.1} parent=0 // pred_fallthru
    _
  // Predicated region
  $region10: #{tpu_custom_call.1} parent=0 // pred_check
    _
  $region11: #{tpu_custom_call.1} parent=0 // pred_check_branch
    %13 = sbr.rel (0) target = $region13
  $region12: #{tpu_custom_call.1} parent=0 // pred_region
    _
  $region13: #{tpu_custom_call.1} parent=0 // pred_fallthru
    _
  %v14 = vld [vmem:[%s0] sm:$0xff]
  %v15 = vld [vmem:[%s0 + $0x8] sm:$0xff]
  %v16 = vld [vmem:[%s0 + $0x10] sm:$0xff]
  %v17 = vld [vmem:[%s0 + $0x18] sm:$0xff]
  %v18 = vld [vmem:[%s0 + $0x20] sm:$0xff]
  %v19 = vld [vmem:[%s0 + $0x28] sm:$0xff]
  %v20 = vld [vmem:[%s0 + $0x30] sm:$0xff]
  %v21 = vld [vmem:[%s0 + $0x38] sm:$0xff]
  %30 = vrot.lane.b32.xlu0 %v14, 112
  %v31 = vpop.permute.xlu0 %30
  %32 = vrot.lane.b32.xlu0 %v15, 112
  %v33 = vpop.permute.xlu0 %32
  %34 = vrot.lane.b32.xlu0 %v16, 112
  %v35 = vpop.permute.xlu0 %34
  %36 = vrot.lane.b32.xlu0 %v17, 112
  %v37 = vpop.permute.xlu0 %36
  %38 = vrot.lane.b32.xlu0 %v18, 112
  %v39 = vpop.permute.xlu0 %38
  %40 = vrot.lane.b32.xlu0 %v19, 112
  %v41 = vpop.permute.xlu0 %40
  %42 = vrot.lane.b32.xlu0 %v20, 112
  %v43 = vpop.permute.xlu0 %42
  %44 = vrot.lane.b32.xlu0 %v21, 112
  %v45 = vpop.permute.xlu0 %44
  %v54 = vmax.f32 %v14, %v31
  %v55 = vmax.f32 %v15, %v33
  %v56 = vmax.f32 %v16, %v35
  %v57 = vmax.f32 %v17, %v37
  %v58 = vmax.f32 %v18, %v39
  %v59 = vmax.f32 %v19, %v41
  %v60 = vmax.f32 %v20, %v43
  %v61 = vmax.f32 %v21, %v45
  %v62 = vld [vmem:[%s1] sm:$0xff]
  %v63 = vld [vmem:[%s1 + $0x8] sm:$0xff]
  %vm64 = vcmask 130048
  %v66 = vsel %vm64, %v54, 0
  %v69 = vsel %vm64, %v55, 0
  %v72 = vsel %vm64, %v56, 0
  %v75 = vsel %vm64, %v57, 0
  %v78 = vsel %vm64, %v58, 0
  %v81 = vsel %vm64, %v59, 0
  %v84 = vsel %vm64, %v60, 0
  %v87 = vsel %vm64, %v61, 0
  %89 = vmatprep.subr.mxu0 0.0
  %90 = vmatpush1.msra.mxu0 0.0
  %91 = vmatprep.subr.mxu0 0.0
  %92 = vmatpush1.msra.mxu0 0.0
  %93 = vmatprep.subr.mxu0 0.0
  %94 = vmatpush1.msra.mxu0 0.0
  %95 = vmatprep.subr.mxu0 0.0
  %96 = vmatpush1.msra.mxu0 0.0
  %97 = vmatprep.subr.mxu0 0.0
  %98 = vmatpush1.msra.mxu0 0.0
  %99 = vmatprep.subr.mxu0 0.0
  %100 = vmatpush1.msra.mxu0 0.0
  %101 = vmatprep.subr.mxu0 0.0
  %102 = vmatpush1.msra.mxu0 0.0
  %103 = vmatprep.subr.mxu0 0.0
  %104 = vmatpush1.msra.mxu0 0.0
  %105 = vmatprep.subr.mxu0 0.0
  %106 = vmatpush1.msra.mxu0 0.0
  %107 = vmatprep.subr.mxu0 0.0
  %108 = vmatpush1.msra.mxu0 0.0
  %109 = vmatprep.subr.mxu0 0.0
  %110 = vmatpush1.msra.mxu0 0.0
  %111 = vmatprep.subr.mxu0 0.0
  %112 = vmatpush1.msra.mxu0 0.0
  %113 = vmatprep.subr.mxu0 0.0
  %114 = vmatpush1.msra.mxu0 0.0
  %115 = vmatprep.subr.mxu0 0.0
  %116 = vmatpush1.msra.mxu0 0.0
  %117 = vmatprep.subr.mxu0 0.0
  %v118 = vand.u32 %v63, 4294901760
  %119 = vmatpush1.msra.mxu0 %v118
  %120 = vmatprep.subr.mxu0 0.0
  %v121 = vand.u32 %v62, 4294901760
  %122 = vmatpush1.msra.mxu0 %v121
  %123 = vmatprep.subr.mxu0 0.0
  %124 = vmatpush2.msra.mxu0 0.0
  %125 = vmatprep.subr.mxu0 0.0
  %126 = vmatpush2.msra.mxu0 0.0
  %127 = vmatprep.subr.mxu0 0.0
  %128 = vmatpush2.msra.mxu0 0.0
  %129 = vmatprep.subr.mxu0 0.0
  %130 = vmatpush2.msra.mxu0 0.0
  %131 = vmatprep.subr.mxu0 0.0
  %132 = vmatpush2.msra.mxu0 0.0
  %133 = vmatprep.subr.mxu0 0.0
  %134 = vmatpush2.msra.mxu0 0.0
  %135 = vmatprep.subr.mxu0 0.0
  %136 = vmatpush2.msra.mxu0 0.0
  %137 = vmatprep.subr.mxu0 0.0
  %138 = vmatpush2.msra.mxu0 0.0
  %139 = vmatprep.subr.mxu0 0.0
  %140 = vmatpush2.msra.mxu0 0.0
  %141 = vmatprep.subr.mxu0 0.0
  %142 = vmatpush2.msra.mxu0 0.0
  %143 = vmatprep.subr.mxu0 0.0
  %144 = vmatpush2.msra.mxu0 0.0
  %145 = vmatprep.subr.mxu0 0.0
  %146 = vmatpush2.msra.mxu0 0.0
  %147 = vmatprep.subr.mxu0 0.0
  %148 = vmatpush2.msra.mxu0 0.0
  %149 = vmatprep.subr.mxu0 0.0
  %150 = vmatpush2.msra.mxu0 0.0
  %151 = vmatprep.subr.mxu0 0.0
  %152 = vmatpush2.msra.mxu0 0.0
  %153 = vmatprep.subr.mxu0 0.0
  %154 = vmatpush2.msra.mxu0 0.0
  %155 = vmatprep.mubr.f32.mxu0 0.0
  %v156 = vand.u32 %v66, 4294901760
  %v157 = vsub.f32 %v66, %v156
  %v158 = vand.u32 %v157, 4294901760
  %v159 = vsub.f32 %v157, %v158
  %v160 = vand.u32 %v159, 4294901760
  %161 = vmatmul.mubr.f32.gmra.mxu0 %v160
  %v162 = vpop.f32.mrf.mxu0
  %v163 = vadd.f32 0.0, %v162
  %v164 = vpop.f32.mrf.mxu0
  %165 = vmatprep.mubr.f32.mxu0 0.0
  %v166 = vand.u32 %v69, 4294901760
  %v167 = vsub.f32 %v69, %v166
  %v168 = vand.u32 %v167, 4294901760
  %v169 = vsub.f32 %v167, %v168
  %v170 = vand.u32 %v169, 4294901760
  %171 = vmatmul.mubr.f32.gmra.mxu0 %v170
  %v172 = vpop.f32.mrf.mxu0
  %v173 = vadd.f32 0.0, %v172
  %v174 = vpop.f32.mrf.mxu0
  %175 = vmatprep.mubr.f32.mxu0 0.0
  %v176 = vand.u32 %v72, 4294901760
  %v177 = vsub.f32 %v72, %v176
  %v178 = vand.u32 %v177, 4294901760
  %v179 = vsub.f32 %v177, %v178
  %v180 = vand.u32 %v179, 4294901760
  %181 = vmatmul.mubr.f32.gmra.mxu0 %v180
  %v182 = vpop.f32.mrf.mxu0
  %v183 = vadd.f32 0.0, %v182
  %v184 = vpop.f32.mrf.mxu0
  %185 = vmatprep.mubr.f32.mxu0 0.0
  %v186 = vand.u32 %v75, 4294901760
  %v187 = vsub.f32 %v75, %v186
  %v188 = vand.u32 %v187, 4294901760
  %v189 = vsub.f32 %v187, %v188
  %v190 = vand.u32 %v189, 4294901760
  %191 = vmatmul.mubr.f32.gmra.mxu0 %v190
  %v192 = vpop.f32.mrf.mxu0
  %v193 = vadd.f32 0.0, %v192
  %v194 = vpop.f32.mrf.mxu0
  %195 = vmatprep.mubr.f32.mxu0 0.0
  %v196 = vand.u32 %v78, 4294901760
  %v197 = vsub.f32 %v78, %v196
  %v198 = vand.u32 %v197, 4294901760
  %v199 = vsub.f32 %v197, %v198
  %v200 = vand.u32 %v199, 4294901760
  %201 = vmatmul.mubr.f32.gmra.mxu0 %v200
  %v202 = vpop.f32.mrf.mxu0
  %v203 = vadd.f32 0.0, %v202
  %v204 = vpop.f32.mrf.mxu0
  %205 = vmatprep.mubr.f32.mxu0 0.0
  %v206 = vand.u32 %v81, 4294901760
  %v207 = vsub.f32 %v81, %v206
  %v208 = vand.u32 %v207, 4294901760
  %v209 = vsub.f32 %v207, %v208
  %v210 = vand.u32 %v209, 4294901760
  %211 = vmatmul.mubr.f32.gmra.mxu0 %v210
  %v212 = vpop.f32.mrf.mxu0
  %v213 = vadd.f32 0.0, %v212
  %v214 = vpop.f32.mrf.mxu0
  %215 = vmatprep.mubr.f32.mxu0 0.0
  %v216 = vand.u32 %v84, 4294901760
  %v217 = vsub.f32 %v84, %v216
  %v218 = vand.u32 %v217, 4294901760
  %v219 = vsub.f32 %v217, %v218
  %v220 = vand.u32 %v219, 4294901760
  %221 = vmatmul.mubr.f32.gmra.mxu0 %v220
  %v222 = vpop.f32.mrf.mxu0
  %v223 = vadd.f32 0.0, %v222
  %v224 = vpop.f32.mrf.mxu0
  %225 = vmatprep.mubr.f32.mxu0 0.0
  %v226 = vand.u32 %v87, 4294901760
  %v227 = vsub.f32 %v87, %v226
  %v228 = vand.u32 %v227, 4294901760
  %v229 = vsub.f32 %v227, %v228
  %v230 = vand.u32 %v229, 4294901760
  %231 = vmatmul.mubr.f32.gmra.mxu0 %v230
  %v232 = vpop.f32.mrf.mxu0
  %v233 = vadd.f32 0.0, %v232
  %v234 = vpop.f32.mrf.mxu0
  %235 = vdwg.mxu0
  %236 = vmatprep.subr.mxu0 0.0
  %237 = vmatpush1.msra.mxu0 0.0
  %238 = vmatprep.subr.mxu0 0.0
  %239 = vmatpush1.msra.mxu0 0.0
  %240 = vmatprep.subr.mxu0 0.0
  %241 = vmatpush1.msra.mxu0 0.0
  %242 = vmatprep.subr.mxu0 0.0
  %243 = vmatpush1.msra.mxu0 0.0
  %244 = vmatprep.subr.mxu0 0.0
  %245 = vmatpush1.msra.mxu0 0.0
  %246 = vmatprep.subr.mxu0 0.0
  %247 = vmatpush1.msra.mxu0 0.0
  %248 = vmatprep.subr.mxu0 0.0
  %249 = vmatpush1.msra.mxu0 0.0
  %250 = vmatprep.subr.mxu0 0.0
  %251 = vmatpush1.msra.mxu0 0.0
  %252 = vmatprep.subr.mxu0 0.0
  %253 = vmatpush1.msra.mxu0 0.0
  %254 = vmatprep.subr.mxu0 0.0
  %255 = vmatpush1.msra.mxu0 0.0
  %256 = vmatprep.subr.mxu0 0.0
  %257 = vmatpush1.msra.mxu0 0.0
  %258 = vmatprep.subr.mxu0 0.0
  %259 = vmatpush1.msra.mxu0 0.0
  %260 = vmatprep.subr.mxu0 0.0
  %261 = vmatpush1.msra.mxu0 0.0
  %262 = vmatprep.subr.mxu0 0.0
  %263 = vmatpush1.msra.mxu0 0.0
  %264 = vmatprep.subr.mxu0 0.0
  %v265 = vand.u32 %v63, 4294901760
  %v266 = vsub.f32 %v63, %v265
  %v267 = vand.u32 %v266, 4294901760
  %v268 = vsub.f32 %v266, %v267
  %v269 = vand.u32 %v268, 4294901760
  %270 = vmatpush1.msra.mxu0 %v269
  %271 = vmatprep.subr.mxu0 0.0
  %v272 = vand.u32 %v62, 4294901760
  %v273 = vsub.f32 %v62, %v272
  %v274 = vand.u32 %v273, 4294901760
  %v275 = vsub.f32 %v273, %v274
  %v276 = vand.u32 %v275, 4294901760
  %277 = vmatpush1.msra.mxu0 %v276
  %278 = vmatprep.subr.mxu0 0.0
  %279 = vmatpush2.msra.mxu0 0.0
  %280 = vmatprep.subr.mxu0 0.0
  %281 = vmatpush2.msra.mxu0 0.0
  %282 = vmatprep.subr.mxu0 0.0
  %283 = vmatpush2.msra.mxu0 0.0
  %284 = vmatprep.subr.mxu0 0.0
  %285 = vmatpush2.msra.mxu0 0.0
  %286 = vmatprep.subr.mxu0 0.0
  %287 = vmatpush2.msra.mxu0 0.0
  %288 = vmatprep.subr.mxu0 0.0
  %289 = vmatpush2.msra.mxu0 0.0
  %290 = vmatprep.subr.mxu0 0.0
  %291 = vmatpush2.msra.mxu0 0.0
  %292 = vmatprep.subr.mxu0 0.0
  %293 = vmatpush2.msra.mxu0 0.0
  %294 = vmatprep.subr.mxu0 0.0
  %295 = vmatpush2.msra.mxu0 0.0
  %296 = vmatprep.subr.mxu0 0.0
  %297 = vmatpush2.msra.mxu0 0.0
  %298 = vmatprep.subr.mxu0 0.0
  %299 = vmatpush2.msra.mxu0 0.0
  %300 = vmatprep.subr.mxu0 0.0
  %301 = vmatpush2.msra.mxu0 0.0
  %302 = vmatprep.subr.mxu0 0.0
  %303 = vmatpush2.msra.mxu0 0.0
  %304 = vmatprep.subr.mxu0 0.0
  %305 = vmatpush2.msra.mxu0 0.0
  %306 = vmatprep.subr.mxu0 0.0
  %307 = vmatpush2.msra.mxu0 0.0
  %308 = vmatprep.subr.mxu0 0.0
  %309 = vmatpush2.msra.mxu0 0.0
  %310 = vmatprep.mubr.f32.mxu0 0.0
  %v311 = vand.u32 %v66, 4294901760
  %312 = vmatmul.mubr.f32.gmra.mxu0 %v311
  %v313 = vpop.f32.mrf.mxu0
  %v314 = vadd.f32 %v163, %v313
  %v315 = vpop.f32.mrf.mxu0
  %316 = vmatprep.mubr.f32.mxu0 0.0
  %v317 = vand.u32 %v69, 4294901760
  %318 = vmatmul.mubr.f32.gmra.mxu0 %v317
  %v319 = vpop.f32.mrf.mxu0
  %v320 = vadd.f32 %v173, %v319
  %v321 = vpop.f32.mrf.mxu0
  %322 = vmatprep.mubr.f32.mxu0 0.0
  %v323 = vand.u32 %v72, 4294901760
  %324 = vmatmul.mubr.f32.gmra.mxu0 %v323
  %v325 = vpop.f32.mrf.mxu0
  %v326 = vadd.f32 %v183, %v325
  %v327 = vpop.f32.mrf.mxu0
  %328 = vmatprep.mubr.f32.mxu0 0.0
  %v329 = vand.u32 %v75, 4294901760
  %330 = vmatmul.mubr.f32.gmra.mxu0 %v329
  %v331 = vpop.f32.mrf.mxu0
  %v332 = vadd.f32 %v193, %v331
  %v333 = vpop.f32.mrf.mxu0
  %334 = vmatprep.mubr.f32.mxu0 0.0
  %v335 = vand.u32 %v78, 4294901760
  %336 = vmatmul.mubr.f32.gmra.mxu0 %v335
  %v337 = vpop.f32.mrf.mxu0
  %v338 = vadd.f32 %v203, %v337
  %v339 = vpop.f32.mrf.mxu0
  %340 = vmatprep.mubr.f32.mxu0 0.0
  %v341 = vand.u32 %v81, 4294901760
  %342 = vmatmul.mubr.f32.gmra.mxu0 %v341
  %v343 = vpop.f32.mrf.mxu0
  %v344 = vadd.f32 %v213, %v343
  %v345 = vpop.f32.mrf.mxu0
  %346 = vmatprep.mubr.f32.mxu0 0.0
  %v347 = vand.u32 %v84, 4294901760
  %348 = vmatmul.mubr.f32.gmra.mxu0 %v347
  %v349 = vpop.f32.mrf.mxu0
  %v350 = vadd.f32 %v223, %v349
  %v351 = vpop.f32.mrf.mxu0
  %352 = vmatprep.mubr.f32.mxu0 0.0
  %v353 = vand.u32 %v87, 4294901760
  %354 = vmatmul.mubr.f32.gmra.mxu0 %v353
  %v355 = vpop.f32.mrf.mxu0
  %v356 = vadd.f32 %v233, %v355
  %v357 = vpop.f32.mrf.mxu0
  %358 = vdwg.mxu0
  %359 = vmatprep.subr.mxu0 0.0
  %360 = vmatpush1.msra.mxu0 0.0
  %361 = vmatprep.subr.mxu0 0.0
  %362 = vmatpush1.msra.mxu0 0.0
  %363 = vmatprep.subr.mxu0 0.0
  %364 = vmatpush1.msra.mxu0 0.0
  %365 = vmatprep.subr.mxu0 0.0
  %366 = vmatpush1.msra.mxu0 0.0
  %367 = vmatprep.subr.mxu0 0.0
  %368 = vmatpush1.msra.mxu0 0.0
  %369 = vmatprep.subr.mxu0 0.0
  %370 = vmatpush1.msra.mxu0 0.0
  %371 = vmatprep.subr.mxu0 0.0
  %372 = vmatpush1.msra.mxu0 0.0
  %373 = vmatprep.subr.mxu0 0.0
  %374 = vmatpush1.msra.mxu0 0.0
  %375 = vmatprep.subr.mxu0 0.0
  %376 = vmatpush1.msra.mxu0 0.0
  %377 = vmatprep.subr.mxu0 0.0
  %378 = vmatpush1.msra.mxu0 0.0
  %379 = vmatprep.subr.mxu0 0.0
  %380 = vmatpush1.msra.mxu0 0.0
  %381 = vmatprep.subr.mxu0 0.0
  %382 = vmatpush1.msra.mxu0 0.0
  %383 = vmatprep.subr.mxu0 0.0
  %384 = vmatpush1.msra.mxu0 0.0
  %385 = vmatprep.subr.mxu0 0.0
  %386 = vmatpush1.msra.mxu0 0.0
  %387 = vmatprep.subr.mxu0 0.0
  %v388 = vand.u32 %v63, 4294901760
  %v389 = vsub.f32 %v63, %v388
  %390 = vmatpush1.msra.mxu0 %v389
  %391 = vmatprep.subr.mxu0 0.0
  %v392 = vand.u32 %v62, 4294901760
  %v393 = vsub.f32 %v62, %v392
  %394 = vmatpush1.msra.mxu0 %v393
  %395 = vmatprep.subr.mxu0 0.0
  %396 = vmatpush2.msra.mxu0 0.0
  %397 = vmatprep.subr.mxu0 0.0
  %398 = vmatpush2.msra.mxu0 0.0
  %399 = vmatprep.subr.mxu0 0.0
  %400 = vmatpush2.msra.mxu0 0.0
  %401 = vmatprep.subr.mxu0 0.0
  %402 = vmatpush2.msra.mxu0 0.0
  %403 = vmatprep.subr.mxu0 0.0
  %404 = vmatpush2.msra.mxu0 0.0
  %405 = vmatprep.subr.mxu0 0.0
  %406 = vmatpush2.msra.mxu0 0.0
  %407 = vmatprep.subr.mxu0 0.0
  %408 = vmatpush2.msra.mxu0 0.0
  %409 = vmatprep.subr.mxu0 0.0
  %410 = vmatpush2.msra.mxu0 0.0
  %411 = vmatprep.subr.mxu0 0.0
  %412 = vmatpush2.msra.mxu0 0.0
  %413 = vmatprep.subr.mxu0 0.0
  %414 = vmatpush2.msra.mxu0 0.0
  %415 = vmatprep.subr.mxu0 0.0
  %416 = vmatpush2.msra.mxu0 0.0
  %417 = vmatprep.subr.mxu0 0.0
  %418 = vmatpush2.msra.mxu0 0.0
  %419 = vmatprep.subr.mxu0 0.0
  %420 = vmatpush2.msra.mxu0 0.0
  %421 = vmatprep.subr.mxu0 0.0
  %422 = vmatpush2.msra.mxu0 0.0
  %423 = vmatprep.subr.mxu0 0.0
  %424 = vmatpush2.msra.mxu0 0.0
  %425 = vmatprep.subr.mxu0 0.0
  %426 = vmatpush2.msra.mxu0 0.0
  %427 = vmatprep.mubr.f32.mxu0 0.0
  %v428 = vand.u32 %v66, 4294901760
  %v429 = vsub.f32 %v66, %v428
  %430 = vmatmul.mubr.f32.gmra.mxu0 %v429
  %v431 = vpop.f32.mrf.mxu0
  %v432 = vadd.f32 %v314, %v431
  %v433 = vpop.f32.mrf.mxu0
  %434 = vmatprep.mubr.f32.mxu0 0.0
  %v435 = vand.u32 %v69, 4294901760
  %v436 = vsub.f32 %v69, %v435
  %437 = vmatmul.mubr.f32.gmra.mxu0 %v436
  %v438 = vpop.f32.mrf.mxu0
  %v439 = vadd.f32 %v320, %v438
  %v440 = vpop.f32.mrf.mxu0
  %441 = vmatprep.mubr.f32.mxu0 0.0
  %v442 = vand.u32 %v72, 4294901760
  %v443 = vsub.f32 %v72, %v442
  %444 = vmatmul.mubr.f32.gmra.mxu0 %v443
  %v445 = vpop.f32.mrf.mxu0
  %v446 = vadd.f32 %v326, %v445
  %v447 = vpop.f32.mrf.mxu0
  %448 = vmatprep.mubr.f32.mxu0 0.0
  %v449 = vand.u32 %v75, 4294901760
  %v450 = vsub.f32 %v75, %v449
  %451 = vmatmul.mubr.f32.gmra.mxu0 %v450
  %v452 = vpop.f32.mrf.mxu0
  %v453 = vadd.f32 %v332, %v452
  %v454 = vpop.f32.mrf.mxu0
  %455 = vmatprep.mubr.f32.mxu0 0.0
  %v456 = vand.u32 %v78, 4294901760
  %v457 = vsub.f32 %v78, %v456
  %458 = vmatmul.mubr.f32.gmra.mxu0 %v457
  %v459 = vpop.f32.mrf.mxu0
  %v460 = vadd.f32 %v338, %v459
  %v461 = vpop.f32.mrf.mxu0
  %462 = vmatprep.mubr.f32.mxu0 0.0
  %v463 = vand.u32 %v81, 4294901760
  %v464 = vsub.f32 %v81, %v463
  %465 = vmatmul.mubr.f32.gmra.mxu0 %v464
  %v466 = vpop.f32.mrf.mxu0
  %v467 = vadd.f32 %v344, %v466
  %v468 = vpop.f32.mrf.mxu0
  %469 = vmatprep.mubr.f32.mxu0 0.0
  %v470 = vand.u32 %v84, 4294901760
  %v471 = vsub.f32 %v84, %v470
  %472 = vmatmul.mubr.f32.gmra.mxu0 %v471
  %v473 = vpop.f32.mrf.mxu0
  %v474 = vadd.f32 %v350, %v473
  %v475 = vpop.f32.mrf.mxu0
  %476 = vmatprep.mubr.f32.mxu0 0.0
  %v477 = vand.u32 %v87, 4294901760
  %v478 = vsub.f32 %v87, %v477
  %479 = vmatmul.mubr.f32.gmra.mxu0 %v478
  %v480 = vpop.f32.mrf.mxu0
  %v481 = vadd.f32 %v356, %v480
  %v482 = vpop.f32.mrf.mxu0
  %483 = vdwg.mxu0
  %484 = vmatprep.subr.mxu0 0.0
  %485 = vmatpush1.msra.mxu0 0.0
  %486 = vmatprep.subr.mxu0 0.0
  %487 = vmatpush1.msra.mxu0 0.0
  %488 = vmatprep.subr.mxu0 0.0
  %489 = vmatpush1.msra.mxu0 0.0
  %490 = vmatprep.subr.mxu0 0.0
  %491 = vmatpush1.msra.mxu0 0.0
  %492 = vmatprep.subr.mxu0 0.0
  %493 = vmatpush1.msra.mxu0 0.0
  %494 = vmatprep.subr.mxu0 0.0
  %495 = vmatpush1.msra.mxu0 0.0
  %496 = vmatprep.subr.mxu0 0.0
  %497 = vmatpush1.msra.mxu0 0.0
  %498 = vmatprep.subr.mxu0 0.0
  %499 = vmatpush1.msra.mxu0 0.0
  %500 = vmatprep.subr.mxu0 0.0
  %501 = vmatpush1.msra.mxu0 0.0
  %502 = vmatprep.subr.mxu0 0.0
  %503 = vmatpush1.msra.mxu0 0.0
  %504 = vmatprep.subr.mxu0 0.0
  %505 = vmatpush1.msra.mxu0 0.0
  %506 = vmatprep.subr.mxu0 0.0
  %507 = vmatpush1.msra.mxu0 0.0
  %508 = vmatprep.subr.mxu0 0.0
  %509 = vmatpush1.msra.mxu0 0.0
  %510 = vmatprep.subr.mxu0 0.0
  %511 = vmatpush1.msra.mxu0 0.0
  %512 = vmatprep.subr.mxu0 0.0
  %v513 = vand.u32 %v63, 4294901760
  %514 = vmatpush1.msra.mxu0 %v513
  %515 = vmatprep.subr.mxu0 0.0
  %v516 = vand.u32 %v62, 4294901760
  %517 = vmatpush1.msra.mxu0 %v516
  %518 = vmatprep.subr.mxu0 0.0
  %519 = vmatpush2.msra.mxu0 0.0
  %520 = vmatprep.subr.mxu0 0.0
  %521 = vmatpush2.msra.mxu0 0.0
  %522 = vmatprep.subr.mxu0 0.0
  %523 = vmatpush2.msra.mxu0 0.0
  %524 = vmatprep.subr.mxu0 0.0
  %525 = vmatpush2.msra.mxu0 0.0
  %526 = vmatprep.subr.mxu0 0.0
  %527 = vmatpush2.msra.mxu0 0.0
  %528 = vmatprep.subr.mxu0 0.0
  %529 = vmatpush2.msra.mxu0 0.0
  %530 = vmatprep.subr.mxu0 0.0
  %531 = vmatpush2.msra.mxu0 0.0
  %532 = vmatprep.subr.mxu0 0.0
  %533 = vmatpush2.msra.mxu0 0.0
  %534 = vmatprep.subr.mxu0 0.0
  %535 = vmatpush2.msra.mxu0 0.0
  %536 = vmatprep.subr.mxu0 0.0
  %537 = vmatpush2.msra.mxu0 0.0
  %538 = vmatprep.subr.mxu0 0.0
  %539 = vmatpush2.msra.mxu0 0.0
  %540 = vmatprep.subr.mxu0 0.0
  %541 = vmatpush2.msra.mxu0 0.0
  %542 = vmatprep.subr.mxu0 0.0
  %543 = vmatpush2.msra.mxu0 0.0
  %544 = vmatprep.subr.mxu0 0.0
  %545 = vmatpush2.msra.mxu0 0.0
  %546 = vmatprep.subr.mxu0 0.0
  %547 = vmatpush2.msra.mxu0 0.0
  %548 = vmatprep.subr.mxu0 0.0
  %549 = vmatpush2.msra.mxu0 0.0
  %550 = vmatprep.mubr.f32.mxu0 0.0
  %v551 = vand.u32 %v66, 4294901760
  %v552 = vsub.f32 %v66, %v551
  %v553 = vand.u32 %v552, 4294901760
  %554 = vmatmul.mubr.f32.gmra.mxu0 %v553
  %v555 = vpop.f32.mrf.mxu0
  %v556 = vadd.f32 %v432, %v555
  %v557 = vpop.f32.mrf.mxu0
  %558 = vmatprep.mubr.f32.mxu0 0.0
  %v559 = vand.u32 %v69, 4294901760
  %v560 = vsub.f32 %v69, %v559
  %v561 = vand.u32 %v560, 4294901760
  %562 = vmatmul.mubr.f32.gmra.mxu0 %v561
  %v563 = vpop.f32.mrf.mxu0
  %v564 = vadd.f32 %v439, %v563
  %v565 = vpop.f32.mrf.mxu0
  %566 = vmatprep.mubr.f32.mxu0 0.0
  %v567 = vand.u32 %v72, 4294901760
  %v568 = vsub.f32 %v72, %v567
  %v569 = vand.u32 %v568, 4294901760
  %570 = vmatmul.mubr.f32.gmra.mxu0 %v569
  %v571 = vpop.f32.mrf.mxu0
  %v572 = vadd.f32 %v446, %v571
  %v573 = vpop.f32.mrf.mxu0
  %574 = vmatprep.mubr.f32.mxu0 0.0
  %v575 = vand.u32 %v75, 4294901760
  %v576 = vsub.f32 %v75, %v575
  %v577 = vand.u32 %v576, 4294901760
  %578 = vmatmul.mubr.f32.gmra.mxu0 %v577
  %v579 = vpop.f32.mrf.mxu0
  %v580 = vadd.f32 %v453, %v579
  %v581 = vpop.f32.mrf.mxu0
  %582 = vmatprep.mubr.f32.mxu0 0.0
  %v583 = vand.u32 %v78, 4294901760
  %v584 = vsub.f32 %v78, %v583
  %v585 = vand.u32 %v584, 4294901760
  %586 = vmatmul.mubr.f32.gmra.mxu0 %v585
  %v587 = vpop.f32.mrf.mxu0
  %v588 = vadd.f32 %v460, %v587
  %v589 = vpop.f32.mrf.mxu0
  %590 = vmatprep.mubr.f32.mxu0 0.0
  %v591 = vand.u32 %v81, 4294901760
  %v592 = vsub.f32 %v81, %v591
  %v593 = vand.u32 %v592, 4294901760
  %594 = vmatmul.mubr.f32.gmra.mxu0 %v593
  %v595 = vpop.f32.mrf.mxu0
  %v596 = vadd.f32 %v467, %v595
  %v597 = vpop.f32.mrf.mxu0
  %598 = vmatprep.mubr.f32.mxu0 0.0
  %v599 = vand.u32 %v84, 4294901760
  %v600 = vsub.f32 %v84, %v599
  %v601 = vand.u32 %v600, 4294901760
  %602 = vmatmul.mubr.f32.gmra.mxu0 %v601
  %v603 = vpop.f32.mrf.mxu0
  %v604 = vadd.f32 %v474, %v603
  %v605 = vpop.f32.mrf.mxu0
  %606 = vmatprep.mubr.f32.mxu0 0.0
  %v607 = vand.u32 %v87, 4294901760
  %v608 = vsub.f32 %v87, %v607
  %v609 = vand.u32 %v608, 4294901760
  %610 = vmatmul.mubr.f32.gmra.mxu0 %v609
  %v611 = vpop.f32.mrf.mxu0
  %v612 = vadd.f32 %v481, %v611
  %v613 = vpop.f32.mrf.mxu0
  %614 = vdwg.mxu0
  %615 = vmatprep.subr.mxu0 0.0
  %616 = vmatpush1.msra.mxu0 0.0
  %617 = vmatprep.subr.mxu0 0.0
  %618 = vmatpush1.msra.mxu0 0.0
  %619 = vmatprep.subr.mxu0 0.0
  %620 = vmatpush1.msra.mxu0 0.0
  %621 = vmatprep.subr.mxu0 0.0
  %622 = vmatpush1.msra.mxu0 0.0
  %623 = vmatprep.subr.mxu0 0.0
  %624 = vmatpush1.msra.mxu0 0.0
  %625 = vmatprep.subr.mxu0 0.0
  %626 = vmatpush1.msra.mxu0 0.0
  %627 = vmatprep.subr.mxu0 0.0
  %628 = vmatpush1.msra.mxu0 0.0
  %629 = vmatprep.subr.mxu0 0.0
  %630 = vmatpush1.msra.mxu0 0.0
  %631 = vmatprep.subr.mxu0 0.0
  %632 = vmatpush1.msra.mxu0 0.0
  %633 = vmatprep.subr.mxu0 0.0
  %634 = vmatpush1.msra.mxu0 0.0
  %635 = vmatprep.subr.mxu0 0.0
  %636 = vmatpush1.msra.mxu0 0.0
  %637 = vmatprep.subr.mxu0 0.0
  %638 = vmatpush1.msra.mxu0 0.0
  %639 = vmatprep.subr.mxu0 0.0
  %640 = vmatpush1.msra.mxu0 0.0
  %641 = vmatprep.subr.mxu0 0.0
  %642 = vmatpush1.msra.mxu0 0.0
  %643 = vmatprep.subr.mxu0 0.0
  %v644 = vand.u32 %v63, 4294901760
  %v645 = vsub.f32 %v63, %v644
  %v646 = vand.u32 %v645, 4294901760
  %647 = vmatpush1.msra.mxu0 %v646
  %648 = vmatprep.subr.mxu0 0.0
  %v649 = vand.u32 %v62, 4294901760
  %v650 = vsub.f32 %v62, %v649
  %v651 = vand.u32 %v650, 4294901760
  %652 = vmatpush1.msra.mxu0 %v651
  %653 = vmatprep.subr.mxu0 0.0
  %654 = vmatpush2.msra.mxu0 0.0
  %655 = vmatprep.subr.mxu0 0.0
  %656 = vmatpush2.msra.mxu0 0.0
  %657 = vmatprep.subr.mxu0 0.0
  %658 = vmatpush2.msra.mxu0 0.0
  %659 = vmatprep.subr.mxu0 0.0
  %660 = vmatpush2.msra.mxu0 0.0
  %661 = vmatprep.subr.mxu0 0.0
  %662 = vmatpush2.msra.mxu0 0.0
  %663 = vmatprep.subr.mxu0 0.0
  %664 = vmatpush2.msra.mxu0 0.0
  %665 = vmatprep.subr.mxu0 0.0
  %666 = vmatpush2.msra.mxu0 0.0
  %667 = vmatprep.subr.mxu0 0.0
  %668 = vmatpush2.msra.mxu0 0.0
  %669 = vmatprep.subr.mxu0 0.0
  %670 = vmatpush2.msra.mxu0 0.0
  %671 = vmatprep.subr.mxu0 0.0
  %672 = vmatpush2.msra.mxu0 0.0
  %673 = vmatprep.subr.mxu0 0.0
  %674 = vmatpush2.msra.mxu0 0.0
  %675 = vmatprep.subr.mxu0 0.0
  %676 = vmatpush2.msra.mxu0 0.0
  %677 = vmatprep.subr.mxu0 0.0
  %678 = vmatpush2.msra.mxu0 0.0
  %679 = vmatprep.subr.mxu0 0.0
  %680 = vmatpush2.msra.mxu0 0.0
  %681 = vmatprep.subr.mxu0 0.0
  %682 = vmatpush2.msra.mxu0 0.0
  %683 = vmatprep.subr.mxu0 0.0
  %684 = vmatpush2.msra.mxu0 0.0
  %685 = vmatprep.mubr.f32.mxu0 0.0
  %v686 = vand.u32 %v66, 4294901760
  %687 = vmatmul.mubr.f32.gmra.mxu0 %v686
  %v688 = vpop.f32.mrf.mxu0
  %v689 = vadd.f32 %v556, %v688
  %v690 = vpop.f32.mrf.mxu0
  %691 = vmatprep.mubr.f32.mxu0 0.0
  %v692 = vand.u32 %v69, 4294901760
  %693 = vmatmul.mubr.f32.gmra.mxu0 %v692
  %v694 = vpop.f32.mrf.mxu0
  %v695 = vadd.f32 %v564, %v694
  %v696 = vpop.f32.mrf.mxu0
  %697 = vmatprep.mubr.f32.mxu0 0.0
  %v698 = vand.u32 %v72, 4294901760
  %699 = vmatmul.mubr.f32.gmra.mxu0 %v698
  %v700 = vpop.f32.mrf.mxu0
  %v701 = vadd.f32 %v572, %v700
  %v702 = vpop.f32.mrf.mxu0
  %703 = vmatprep.mubr.f32.mxu0 0.0
  %v704 = vand.u32 %v75, 4294901760
  %705 = vmatmul.mubr.f32.gmra.mxu0 %v704
  %v706 = vpop.f32.mrf.mxu0
  %v707 = vadd.f32 %v580, %v706
  %v708 = vpop.f32.mrf.mxu0
  %709 = vmatprep.mubr.f32.mxu0 0.0
  %v710 = vand.u32 %v78, 4294901760
  %711 = vmatmul.mubr.f32.gmra.mxu0 %v710
  %v712 = vpop.f32.mrf.mxu0
  %v713 = vadd.f32 %v588, %v712
  %v714 = vpop.f32.mrf.mxu0
  %715 = vmatprep.mubr.f32.mxu0 0.0
  %v716 = vand.u32 %v81, 4294901760
  %717 = vmatmul.mubr.f32.gmra.mxu0 %v716
  %v718 = vpop.f32.mrf.mxu0
  %v719 = vadd.f32 %v596, %v718
  %v720 = vpop.f32.mrf.mxu0
  %721 = vmatprep.mubr.f32.mxu0 0.0
  %v722 = vand.u32 %v84, 4294901760
  %723 = vmatmul.mubr.f32.gmra.mxu0 %v722
  %v724 = vpop.f32.mrf.mxu0
  %v725 = vadd.f32 %v604, %v724
  %v726 = vpop.f32.mrf.mxu0
  %727 = vmatprep.mubr.f32.mxu0 0.0
  %v728 = vand.u32 %v87, 4294901760
  %729 = vmatmul.mubr.f32.gmra.mxu0 %v728
  %v730 = vpop.f32.mrf.mxu0
  %v731 = vadd.f32 %v612, %v730
  %v732 = vpop.f32.mrf.mxu0
  %733 = vdwg.mxu0
  %734 = vmatprep.subr.mxu0 0.0
  %735 = vmatpush1.msra.mxu0 0.0
  %736 = vmatprep.subr.mxu0 0.0
  %737 = vmatpush1.msra.mxu0 0.0
  %738 = vmatprep.subr.mxu0 0.0
  %739 = vmatpush1.msra.mxu0 0.0
  %740 = vmatprep.subr.mxu0 0.0
  %741 = vmatpush1.msra.mxu0 0.0
  %742 = vmatprep.subr.mxu0 0.0
  %743 = vmatpush1.msra.mxu0 0.0
  %744 = vmatprep.subr.mxu0 0.0
  %745 = vmatpush1.msra.mxu0 0.0
  %746 = vmatprep.subr.mxu0 0.0
  %747 = vmatpush1.msra.mxu0 0.0
  %748 = vmatprep.subr.mxu0 0.0
  %749 = vmatpush1.msra.mxu0 0.0
  %750 = vmatprep.subr.mxu0 0.0
  %751 = vmatpush1.msra.mxu0 0.0
  %752 = vmatprep.subr.mxu0 0.0
  %753 = vmatpush1.msra.mxu0 0.0
  %754 = vmatprep.subr.mxu0 0.0
  %755 = vmatpush1.msra.mxu0 0.0
  %756 = vmatprep.subr.mxu0 0.0
  %757 = vmatpush1.msra.mxu0 0.0
  %758 = vmatprep.subr.mxu0 0.0
  %759 = vmatpush1.msra.mxu0 0.0
  %760 = vmatprep.subr.mxu0 0.0
  %761 = vmatpush1.msra.mxu0 0.0
  %762 = vmatprep.subr.mxu0 0.0
  %v763 = vand.u32 %v63, 4294901760
  %764 = vmatpush1.msra.mxu0 %v763
  %765 = vmatprep.subr.mxu0 0.0
  %v766 = vand.u32 %v62, 4294901760
  %767 = vmatpush1.msra.mxu0 %v766
  %768 = vmatprep.subr.mxu0 0.0
  %769 = vmatpush2.msra.mxu0 0.0
  %770 = vmatprep.subr.mxu0 0.0
  %771 = vmatpush2.msra.mxu0 0.0
  %772 = vmatprep.subr.mxu0 0.0
  %773 = vmatpush2.msra.mxu0 0.0
  %774 = vmatprep.subr.mxu0 0.0
  %775 = vmatpush2.msra.mxu0 0.0
  %776 = vmatprep.subr.mxu0 0.0
  %777 = vmatpush2.msra.mxu0 0.0
  %778 = vmatprep.subr.mxu0 0.0
  %779 = vmatpush2.msra.mxu0 0.0
  %780 = vmatprep.subr.mxu0 0.0
  %781 = vmatpush2.msra.mxu0 0.0
  %782 = vmatprep.subr.mxu0 0.0
  %783 = vmatpush2.msra.mxu0 0.0
  %784 = vmatprep.subr.mxu0 0.0
  %785 = vmatpush2.msra.mxu0 0.0
  %786 = vmatprep.subr.mxu0 0.0
  %787 = vmatpush2.msra.mxu0 0.0
  %788 = vmatprep.subr.mxu0 0.0
  %789 = vmatpush2.msra.mxu0 0.0
  %790 = vmatprep.subr.mxu0 0.0
  %791 = vmatpush2.msra.mxu0 0.0
  %792 = vmatprep.subr.mxu0 0.0
  %793 = vmatpush2.msra.mxu0 0.0
  %794 = vmatprep.subr.mxu0 0.0
  %795 = vmatpush2.msra.mxu0 0.0
  %796 = vmatprep.subr.mxu0 0.0
  %797 = vmatpush2.msra.mxu0 0.0
  %798 = vmatprep.subr.mxu0 0.0
  %799 = vmatpush2.msra.mxu0 0.0
  %800 = vmatprep.mubr.f32.mxu0 0.0
  %v801 = vand.u32 %v66, 4294901760
  %802 = vmatmul.mubr.f32.gmra.mxu0 %v801
  %v803 = vpop.f32.mrf.mxu0
  %v804 = vadd.f32 %v689, %v803
  %v805 = vpop.f32.mrf.mxu0
  %806 = vmatprep.mubr.f32.mxu0 0.0
  %v807 = vand.u32 %v69, 4294901760
  %808 = vmatmul.mubr.f32.gmra.mxu0 %v807
  %v809 = vpop.f32.mrf.mxu0
  %v810 = vadd.f32 %v695, %v809
  %v811 = vpop.f32.mrf.mxu0
  %812 = vmatprep.mubr.f32.mxu0 0.0
  %v813 = vand.u32 %v72, 4294901760
  %814 = vmatmul.mubr.f32.gmra.mxu0 %v813
  %v815 = vpop.f32.mrf.mxu0
  %v816 = vadd.f32 %v701, %v815
  %v817 = vpop.f32.mrf.mxu0
  %818 = vmatprep.mubr.f32.mxu0 0.0
  %v819 = vand.u32 %v75, 4294901760
  %820 = vmatmul.mubr.f32.gmra.mxu0 %v819
  %v821 = vpop.f32.mrf.mxu0
  %v822 = vadd.f32 %v707, %v821
  %v823 = vpop.f32.mrf.mxu0
  %824 = vmatprep.mubr.f32.mxu0 0.0
  %v825 = vand.u32 %v78, 4294901760
  %826 = vmatmul.mubr.f32.gmra.mxu0 %v825
  %v827 = vpop.f32.mrf.mxu0
  %v828 = vadd.f32 %v713, %v827
  %v829 = vpop.f32.mrf.mxu0
  %830 = vmatprep.mubr.f32.mxu0 0.0
  %v831 = vand.u32 %v81, 4294901760
  %832 = vmatmul.mubr.f32.gmra.mxu0 %v831
  %v833 = vpop.f32.mrf.mxu0
  %v834 = vadd.f32 %v719, %v833
  %v835 = vpop.f32.mrf.mxu0
  %836 = vmatprep.mubr.f32.mxu0 0.0
  %v837 = vand.u32 %v84, 4294901760
  %838 = vmatmul.mubr.f32.gmra.mxu0 %v837
  %v839 = vpop.f32.mrf.mxu0
  %v840 = vadd.f32 %v725, %v839
  %v841 = vpop.f32.mrf.mxu0
  %842 = vmatprep.mubr.f32.mxu0 0.0
  %v843 = vand.u32 %v87, 4294901760
  %844 = vmatmul.mubr.f32.gmra.mxu0 %v843
  %v845 = vpop.f32.mrf.mxu0
  %v846 = vadd.f32 %v731, %v845
  %v847 = vpop.f32.mrf.mxu0
  %848 = vdwg.mxu0
  %v849 = vld [vmem:[%s2] sm:$0xff]
  %v850 = vld [vmem:[%s2 + $0x8] sm:$0xff]
  %851 = vmatprep.subr.mxu0 0.0
  %852 = vmatpush1.msra.mxu0 0.0
  %853 = vmatprep.subr.mxu0 0.0
  %854 = vmatpush1.msra.mxu0 0.0
  %855 = vmatprep.subr.mxu0 0.0
  %856 = vmatpush1.msra.mxu0 0.0
  %857 = vmatprep.subr.mxu0 0.0
  %858 = vmatpush1.msra.mxu0 0.0
  %859 = vmatprep.subr.mxu0 0.0
  %860 = vmatpush1.msra.mxu0 0.0
  %861 = vmatprep.subr.mxu0 0.0
  %862 = vmatpush1.msra.mxu0 0.0
  %863 = vmatprep.subr.mxu0 0.0
  %864 = vmatpush1.msra.mxu0 0.0
  %865 = vmatprep.subr.mxu0 0.0
  %866 = vmatpush1.msra.mxu0 0.0
  %867 = vmatprep.subr.mxu0 0.0
  %868 = vmatpush1.msra.mxu0 0.0
  %869 = vmatprep.subr.mxu0 0.0
  %870 = vmatpush1.msra.mxu0 0.0
  %871 = vmatprep.subr.mxu0 0.0
  %872 = vmatpush1.msra.mxu0 0.0
  %873 = vmatprep.subr.mxu0 0.0
  %874 = vmatpush1.msra.mxu0 0.0
  %875 = vmatprep.subr.mxu0 0.0
  %876 = vmatpush1.msra.mxu0 0.0
  %877 = vmatprep.subr.mxu0 0.0
  %878 = vmatpush1.msra.mxu0 0.0
  %879 = vmatprep.subr.mxu0 0.0
  %v880 = vand.u32 %v850, 4294901760
  %881 = vmatpush1.msra.mxu0 %v880
  %882 = vmatprep.subr.mxu0 0.0
  %v883 = vand.u32 %v849, 4294901760
  %884 = vmatpush1.msra.mxu0 %v883
  %885 = vmatprep.subr.mxu0 0.0
  %886 = vmatpush2.msra.mxu0 0.0
  %887 = vmatprep.subr.mxu0 0.0
  %888 = vmatpush2.msra.mxu0 0.0
  %889 = vmatprep.subr.mxu0 0.0
  %890 = vmatpush2.msra.mxu0 0.0
  %891 = vmatprep.subr.mxu0 0.0
  %892 = vmatpush2.msra.mxu0 0.0
  %893 = vmatprep.subr.mxu0 0.0
  %894 = vmatpush2.msra.mxu0 0.0
  %895 = vmatprep.subr.mxu0 0.0
  %896 = vmatpush2.msra.mxu0 0.0
  %897 = vmatprep.subr.mxu0 0.0
  %898 = vmatpush2.msra.mxu0 0.0
  %899 = vmatprep.subr.mxu0 0.0
  %900 = vmatpush2.msra.mxu0 0.0
  %901 = vmatprep.subr.mxu0 0.0
  %902 = vmatpush2.msra.mxu0 0.0
  %903 = vmatprep.subr.mxu0 0.0
  %904 = vmatpush2.msra.mxu0 0.0
  %905 = vmatprep.subr.mxu0 0.0
  %906 = vmatpush2.msra.mxu0 0.0
  %907 = vmatprep.subr.mxu0 0.0
  %908 = vmatpush2.msra.mxu0 0.0
  %909 = vmatprep.subr.mxu0 0.0
  %910 = vmatpush2.msra.mxu0 0.0
  %911 = vmatprep.subr.mxu0 0.0
  %912 = vmatpush2.msra.mxu0 0.0
  %913 = vmatprep.subr.mxu0 0.0
  %914 = vmatpush2.msra.mxu0 0.0
  %915 = vmatprep.subr.mxu0 0.0
  %916 = vmatpush2.msra.mxu0 0.0
  %917 = vmatprep.mubr.f32.mxu0 0.0
  %v918 = vand.u32 %v66, 4294901760
  %v919 = vsub.f32 %v66, %v918
  %v920 = vand.u32 %v919, 4294901760
  %v921 = vsub.f32 %v919, %v920
  %v922 = vand.u32 %v921, 4294901760
  %923 = vmatmul.mubr.f32.gmra.mxu0 %v922
  %v924 = vpop.f32.mrf.mxu0
  %v925 = vadd.f32 0.0, %v924
  %v926 = vpop.f32.mrf.mxu0
  %927 = vmatprep.mubr.f32.mxu0 0.0
  %v928 = vand.u32 %v69, 4294901760
  %v929 = vsub.f32 %v69, %v928
  %v930 = vand.u32 %v929, 4294901760
  %v931 = vsub.f32 %v929, %v930
  %v932 = vand.u32 %v931, 4294901760
  %933 = vmatmul.mubr.f32.gmra.mxu0 %v932
  %v934 = vpop.f32.mrf.mxu0
  %v935 = vadd.f32 0.0, %v934
  %v936 = vpop.f32.mrf.mxu0
  %937 = vmatprep.mubr.f32.mxu0 0.0
  %v938 = vand.u32 %v72, 4294901760
  %v939 = vsub.f32 %v72, %v938
  %v940 = vand.u32 %v939, 4294901760
  %v941 = vsub.f32 %v939, %v940
  %v942 = vand.u32 %v941, 4294901760
  %943 = vmatmul.mubr.f32.gmra.mxu0 %v942
  %v944 = vpop.f32.mrf.mxu0
  %v945 = vadd.f32 0.0, %v944
  %v946 = vpop.f32.mrf.mxu0
  %947 = vmatprep.mubr.f32.mxu0 0.0
  %v948 = vand.u32 %v75, 4294901760
  %v949 = vsub.f32 %v75, %v948
  %v950 = vand.u32 %v949, 4294901760
  %v951 = vsub.f32 %v949, %v950
  %v952 = vand.u32 %v951, 4294901760
  %953 = vmatmul.mubr.f32.gmra.mxu0 %v952
  %v954 = vpop.f32.mrf.mxu0
  %v955 = vadd.f32 0.0, %v954
  %v956 = vpop.f32.mrf.mxu0
  %957 = vmatprep.mubr.f32.mxu0 0.0
  %v958 = vand.u32 %v78, 4294901760
  %v959 = vsub.f32 %v78, %v958
  %v960 = vand.u32 %v959, 4294901760
  %v961 = vsub.f32 %v959, %v960
  %v962 = vand.u32 %v961, 4294901760
  %963 = vmatmul.mubr.f32.gmra.mxu0 %v962
  %v964 = vpop.f32.mrf.mxu0
  %v965 = vadd.f32 0.0, %v964
  %v966 = vpop.f32.mrf.mxu0
  %967 = vmatprep.mubr.f32.mxu0 0.0
  %v968 = vand.u32 %v81, 4294901760
  %v969 = vsub.f32 %v81, %v968
  %v970 = vand.u32 %v969, 4294901760
  %v971 = vsub.f32 %v969, %v970
  %v972 = vand.u32 %v971, 4294901760
  %973 = vmatmul.mubr.f32.gmra.mxu0 %v972
  %v974 = vpop.f32.mrf.mxu0
  %v975 = vadd.f32 0.0, %v974
  %v976 = vpop.f32.mrf.mxu0
  %977 = vmatprep.mubr.f32.mxu0 0.0
  %v978 = vand.u32 %v84, 4294901760
  %v979 = vsub.f32 %v84, %v978
  %v980 = vand.u32 %v979, 4294901760
  %v981 = vsub.f32 %v979, %v980
  %v982 = vand.u32 %v981, 4294901760
  %983 = vmatmul.mubr.f32.gmra.mxu0 %v982
  %v984 = vpop.f32.mrf.mxu0
  %v985 = vadd.f32 0.0, %v984
  %v986 = vpop.f32.mrf.mxu0
  %987 = vmatprep.mubr.f32.mxu0 0.0
  %v988 = vand.u32 %v87, 4294901760
  %v989 = vsub.f32 %v87, %v988
  %v990 = vand.u32 %v989, 4294901760
  %v991 = vsub.f32 %v989, %v990
  %v992 = vand.u32 %v991, 4294901760
  %993 = vmatmul.mubr.f32.gmra.mxu0 %v992
  %v994 = vpop.f32.mrf.mxu0
  %v995 = vadd.f32 0.0, %v994
  %v996 = vpop.f32.mrf.mxu0
  %997 = vdwg.mxu0
  %998 = vmatprep.subr.mxu0 0.0
  %999 = vmatpush1.msra.mxu0 0.0
  %1000 = vmatprep.subr.mxu0 0.0
  %1001 = vmatpush1.msra.mxu0 0.0
  %1002 = vmatprep.subr.mxu0 0.0
  %1003 = vmatpush1.msra.mxu0 0.0
  %1004 = vmatprep.subr.mxu0 0.0
  %1005 = vmatpush1.msra.mxu0 0.0
  %1006 = vmatprep.subr.mxu0 0.0
  %1007 = vmatpush1.msra.mxu0 0.0
  %1008 = vmatprep.subr.mxu0 0.0
  %1009 = vmatpush1.msra.mxu0 0.0
  %1010 = vmatprep.subr.mxu0 0.0
  %1011 = vmatpush1.msra.mxu0 0.0
  %1012 = vmatprep.subr.mxu0 0.0
  %1013 = vmatpush1.msra.mxu0 0.0
  %1014 = vmatprep.subr.mxu0 0.0
  %1015 = vmatpush1.msra.mxu0 0.0
  %1016 = vmatprep.subr.mxu0 0.0
  %1017 = vmatpush1.msra.mxu0 0.0
  %1018 = vmatprep.subr.mxu0 0.0
  %1019 = vmatpush1.msra.mxu0 0.0
  %1020 = vmatprep.subr.mxu0 0.0
  %1021 = vmatpush1.msra.mxu0 0.0
  %1022 = vmatprep.subr.mxu0 0.0
  %1023 = vmatpush1.msra.mxu0 0.0
  %1024 = vmatprep.subr.mxu0 0.0
  %1025 = vmatpush1.msra.mxu0 0.0
  %1026 = vmatprep.subr.mxu0 0.0
  %v1027 = vand.u32 %v850, 4294901760
  %v1028 = vsub.f32 %v850, %v1027
  %v1029 = vand.u32 %v1028, 4294901760
  %v1030 = vsub.f32 %v1028, %v1029
  %v1031 = vand.u32 %v1030, 4294901760
  %1032 = vmatpush1.msra.mxu0 %v1031
  %1033 = vmatprep.subr.mxu0 0.0
  %v1034 = vand.u32 %v849, 4294901760
  %v1035 = vsub.f32 %v849, %v1034
  %v1036 = vand.u32 %v1035, 4294901760
  %v1037 = vsub.f32 %v1035, %v1036
  %v1038 = vand.u32 %v1037, 4294901760
  %1039 = vmatpush1.msra.mxu0 %v1038
  %1040 = vmatprep.subr.mxu0 0.0
  %1041 = vmatpush2.msra.mxu0 0.0
  %1042 = vmatprep.subr.mxu0 0.0
  %1043 = vmatpush2.msra.mxu0 0.0
  %1044 = vmatprep.subr.mxu0 0.0
  %1045 = vmatpush2.msra.mxu0 0.0
  %1046 = vmatprep.subr.mxu0 0.0
  %1047 = vmatpush2.msra.mxu0 0.0
  %1048 = vmatprep.subr.mxu0 0.0
  %1049 = vmatpush2.msra.mxu0 0.0
  %1050 = vmatprep.subr.mxu0 0.0
  %1051 = vmatpush2.msra.mxu0 0.0
  %1052 = vmatprep.subr.mxu0 0.0
  %1053 = vmatpush2.msra.mxu0 0.0
  %1054 = vmatprep.subr.mxu0 0.0
  %1055 = vmatpush2.msra.mxu0 0.0
  %1056 = vmatprep.subr.mxu0 0.0
  %1057 = vmatpush2.msra.mxu0 0.0
  %1058 = vmatprep.subr.mxu0 0.0
  %1059 = vmatpush2.msra.mxu0 0.0
  %1060 = vmatprep.subr.mxu0 0.0
  %1061 = vmatpush2.msra.mxu0 0.0
  %1062 = vmatprep.subr.mxu0 0.0
  %1063 = vmatpush2.msra.mxu0 0.0
  %1064 = vmatprep.subr.mxu0 0.0
  %1065 = vmatpush2.msra.mxu0 0.0
  %1066 = vmatprep.subr.mxu0 0.0
  %1067 = vmatpush2.msra.mxu0 0.0
  %1068 = vmatprep.subr.mxu0 0.0
  %1069 = vmatpush2.msra.mxu0 0.0
  %1070 = vmatprep.subr.mxu0 0.0
  %1071 = vmatpush2.msra.mxu0 0.0
  %1072 = vmatprep.mubr.f32.mxu0 0.0
  %v1073 = vand.u32 %v66, 4294901760
  %1074 = vmatmul.mubr.f32.gmra.mxu0 %v1073
  %v1075 = vpop.f32.mrf.mxu0
  %v1076 = vadd.f32 %v925, %v1075
  %v1077 = vpop.f32.mrf.mxu0
  %1078 = vmatprep.mubr.f32.mxu0 0.0
  %v1079 = vand.u32 %v69, 4294901760
  %1080 = vmatmul.mubr.f32.gmra.mxu0 %v1079
  %v1081 = vpop.f32.mrf.mxu0
  %v1082 = vadd.f32 %v935, %v1081
  %v1083 = vpop.f32.mrf.mxu0
  %1084 = vmatprep.mubr.f32.mxu0 0.0
  %v1085 = vand.u32 %v72, 4294901760
  %1086 = vmatmul.mubr.f32.gmra.mxu0 %v1085
  %v1087 = vpop.f32.mrf.mxu0
  %v1088 = vadd.f32 %v945, %v1087
  %v1089 = vpop.f32.mrf.mxu0
  %1090 = vmatprep.mubr.f32.mxu0 0.0
  %v1091 = vand.u32 %v75, 4294901760
  %1092 = vmatmul.mubr.f32.gmra.mxu0 %v1091
  %v1093 = vpop.f32.mrf.mxu0
  %v1094 = vadd.f32 %v955, %v1093
  %v1095 = vpop.f32.mrf.mxu0
  %1096 = vmatprep.mubr.f32.mxu0 0.0
  %v1097 = vand.u32 %v78, 4294901760
  %1098 = vmatmul.mubr.f32.gmra.mxu0 %v1097
  %v1099 = vpop.f32.mrf.mxu0
  %v1100 = vadd.f32 %v965, %v1099
  %v1101 = vpop.f32.mrf.mxu0
  %1102 = vmatprep.mubr.f32.mxu0 0.0
  %v1103 = vand.u32 %v81, 4294901760
  %1104 = vmatmul.mubr.f32.gmra.mxu0 %v1103
  %v1105 = vpop.f32.mrf.mxu0
  %v1106 = vadd.f32 %v975, %v1105
  %v1107 = vpop.f32.mrf.mxu0
  %1108 = vmatprep.mubr.f32.mxu0 0.0
  %v1109 = vand.u32 %v84, 4294901760
  %1110 = vmatmul.mubr.f32.gmra.mxu0 %v1109
  %v1111 = vpop.f32.mrf.mxu0
  %v1112 = vadd.f32 %v985, %v1111
  %v1113 = vpop.f32.mrf.mxu0
  %1114 = vmatprep.mubr.f32.mxu0 0.0
  %v1115 = vand.u32 %v87, 4294901760
  %1116 = vmatmul.mubr.f32.gmra.mxu0 %v1115
  %v1117 = vpop.f32.mrf.mxu0
  %v1118 = vadd.f32 %v995, %v1117
  %v1119 = vpop.f32.mrf.mxu0
  %1120 = vdwg.mxu0
  %1121 = vmatprep.subr.mxu0 0.0
  %1122 = vmatpush1.msra.mxu0 0.0
  %1123 = vmatprep.subr.mxu0 0.0
  %1124 = vmatpush1.msra.mxu0 0.0
  %1125 = vmatprep.subr.mxu0 0.0
  %1126 = vmatpush1.msra.mxu0 0.0
  %1127 = vmatprep.subr.mxu0 0.0
  %1128 = vmatpush1.msra.mxu0 0.0
  %1129 = vmatprep.subr.mxu0 0.0
  %1130 = vmatpush1.msra.mxu0 0.0
  %1131 = vmatprep.subr.mxu0 0.0
  %1132 = vmatpush1.msra.mxu0 0.0
  %1133 = vmatprep.subr.mxu0 0.0
  %1134 = vmatpush1.msra.mxu0 0.0
  %1135 = vmatprep.subr.mxu0 0.0
  %1136 = vmatpush1.msra.mxu0 0.0
  %1137 = vmatprep.subr.mxu0 0.0
  %1138 = vmatpush1.msra.mxu0 0.0
  %1139 = vmatprep.subr.mxu0 0.0
  %1140 = vmatpush1.msra.mxu0 0.0
  %1141 = vmatprep.subr.mxu0 0.0
  %1142 = vmatpush1.msra.mxu0 0.0
  %1143 = vmatprep.subr.mxu0 0.0
  %1144 = vmatpush1.msra.mxu0 0.0
  %1145 = vmatprep.subr.mxu0 0.0
  %1146 = vmatpush1.msra.mxu0 0.0
  %1147 = vmatprep.subr.mxu0 0.0
  %1148 = vmatpush1.msra.mxu0 0.0
  %1149 = vmatprep.subr.mxu0 0.0
  %v1150 = vand.u32 %v850, 4294901760
  %v1151 = vsub.f32 %v850, %v1150
  %1152 = vmatpush1.msra.mxu0 %v1151
  %1153 = vmatprep.subr.mxu0 0.0
  %v1154 = vand.u32 %v849, 4294901760
  %v1155 = vsub.f32 %v849, %v1154
  %1156 = vmatpush1.msra.mxu0 %v1155
  %1157 = vmatprep.subr.mxu0 0.0
  %1158 = vmatpush2.msra.mxu0 0.0
  %1159 = vmatprep.subr.mxu0 0.0
  %1160 = vmatpush2.msra.mxu0 0.0
  %1161 = vmatprep.subr.mxu0 0.0
  %1162 = vmatpush2.msra.mxu0 0.0
  %1163 = vmatprep.subr.mxu0 0.0
  %1164 = vmatpush2.msra.mxu0 0.0
  %1165 = vmatprep.subr.mxu0 0.0
  %1166 = vmatpush2.msra.mxu0 0.0
  %1167 = vmatprep.subr.mxu0 0.0
  %1168 = vmatpush2.msra.mxu0 0.0
  %1169 = vmatprep.subr.mxu0 0.0
  %1170 = vmatpush2.msra.mxu0 0.0
  %1171 = vmatprep.subr.mxu0 0.0
  %1172 = vmatpush2.msra.mxu0 0.0
  %1173 = vmatprep.subr.mxu0 0.0
  %1174 = vmatpush2.msra.mxu0 0.0
  %1175 = vmatprep.subr.mxu0 0.0
  %1176 = vmatpush2.msra.mxu0 0.0
  %1177 = vmatprep.subr.mxu0 0.0
  %1178 = vmatpush2.msra.mxu0 0.0
  %1179 = vmatprep.subr.mxu0 0.0
  %1180 = vmatpush2.msra.mxu0 0.0
  %1181 = vmatprep.subr.mxu0 0.0
  %1182 = vmatpush2.msra.mxu0 0.0
  %1183 = vmatprep.subr.mxu0 0.0
  %1184 = vmatpush2.msra.mxu0 0.0
  %1185 = vmatprep.subr.mxu0 0.0
  %1186 = vmatpush2.msra.mxu0 0.0
  %1187 = vmatprep.subr.mxu0 0.0
  %1188 = vmatpush2.msra.mxu0 0.0
  %1189 = vmatprep.mubr.f32.mxu0 0.0
  %v1190 = vand.u32 %v66, 4294901760
  %v1191 = vsub.f32 %v66, %v1190
  %1192 = vmatmul.mubr.f32.gmra.mxu0 %v1191
  %v1193 = vpop.f32.mrf.mxu0
  %v1194 = vadd.f32 %v1076, %v1193
  %v1195 = vpop.f32.mrf.mxu0
  %1196 = vmatprep.mubr.f32.mxu0 0.0
  %v1197 = vand.u32 %v69, 4294901760
  %v1198 = vsub.f32 %v69, %v1197
  %1199 = vmatmul.mubr.f32.gmra.mxu0 %v1198
  %v1200 = vpop.f32.mrf.mxu0
  %v1201 = vadd.f32 %v1082, %v1200
  %v1202 = vpop.f32.mrf.mxu0
  %1203 = vmatprep.mubr.f32.mxu0 0.0
  %v1204 = vand.u32 %v72, 4294901760
  %v1205 = vsub.f32 %v72, %v1204
  %1206 = vmatmul.mubr.f32.gmra.mxu0 %v1205
  %v1207 = vpop.f32.mrf.mxu0
  %v1208 = vadd.f32 %v1088, %v1207
  %v1209 = vpop.f32.mrf.mxu0
  %1210 = vmatprep.mubr.f32.mxu0 0.0
  %v1211 = vand.u32 %v75, 4294901760
  %v1212 = vsub.f32 %v75, %v1211
  %1213 = vmatmul.mubr.f32.gmra.mxu0 %v1212
  %v1214 = vpop.f32.mrf.mxu0
  %v1215 = vadd.f32 %v1094, %v1214
  %v1216 = vpop.f32.mrf.mxu0
  %1217 = vmatprep.mubr.f32.mxu0 0.0
  %v1218 = vand.u32 %v78, 4294901760
  %v1219 = vsub.f32 %v78, %v1218
  %1220 = vmatmul.mubr.f32.gmra.mxu0 %v1219
  %v1221 = vpop.f32.mrf.mxu0
  %v1222 = vadd.f32 %v1100, %v1221
  %v1223 = vpop.f32.mrf.mxu0
  %1224 = vmatprep.mubr.f32.mxu0 0.0
  %v1225 = vand.u32 %v81, 4294901760
  %v1226 = vsub.f32 %v81, %v1225
  %1227 = vmatmul.mubr.f32.gmra.mxu0 %v1226
  %v1228 = vpop.f32.mrf.mxu0
  %v1229 = vadd.f32 %v1106, %v1228
  %v1230 = vpop.f32.mrf.mxu0
  %1231 = vmatprep.mubr.f32.mxu0 0.0
  %v1232 = vand.u32 %v84, 4294901760
  %v1233 = vsub.f32 %v84, %v1232
  %1234 = vmatmul.mubr.f32.gmra.mxu0 %v1233
  %v1235 = vpop.f32.mrf.mxu0
  %v1236 = vadd.f32 %v1112, %v1235
  %v1237 = vpop.f32.mrf.mxu0
  %1238 = vmatprep.mubr.f32.mxu0 0.0
  %v1239 = vand.u32 %v87, 4294901760
  %v1240 = vsub.f32 %v87, %v1239
  %1241 = vmatmul.mubr.f32.gmra.mxu0 %v1240
  %v1242 = vpop.f32.mrf.mxu0
  %v1243 = vadd.f32 %v1118, %v1242
  %v1244 = vpop.f32.mrf.mxu0
  %1245 = vdwg.mxu0
  %1246 = vmatprep.subr.mxu0 0.0
  %1247 = vmatpush1.msra.mxu0 0.0
  %1248 = vmatprep.subr.mxu0 0.0
  %1249 = vmatpush1.msra.mxu0 0.0
  %1250 = vmatprep.subr.mxu0 0.0
  %1251 = vmatpush1.msra.mxu0 0.0
  %1252 = vmatprep.subr.mxu0 0.0
  %1253 = vmatpush1.msra.mxu0 0.0
  %1254 = vmatprep.subr.mxu0 0.0
  %1255 = vmatpush1.msra.mxu0 0.0
  %1256 = vmatprep.subr.mxu0 0.0
  %1257 = vmatpush1.msra.mxu0 0.0
  %1258 = vmatprep.subr.mxu0 0.0
  %1259 = vmatpush1.msra.mxu0 0.0
  %1260 = vmatprep.subr.mxu0 0.0
  %1261 = vmatpush1.msra.mxu0 0.0
  %1262 = vmatprep.subr.mxu0 0.0
  %1263 = vmatpush1.msra.mxu0 0.0
  %1264 = vmatprep.subr.mxu0 0.0
  %1265 = vmatpush1.msra.mxu0 0.0
  %1266 = vmatprep.subr.mxu0 0.0
  %1267 = vmatpush1.msra.mxu0 0.0
  %1268 = vmatprep.subr.mxu0 0.0
  %1269 = vmatpush1.msra.mxu0 0.0
  %1270 = vmatprep.subr.mxu0 0.0
  %1271 = vmatpush1.msra.mxu0 0.0
  %1272 = vmatprep.subr.mxu0 0.0
  %1273 = vmatpush1.msra.mxu0 0.0
  %1274 = vmatprep.subr.mxu0 0.0
  %v1275 = vand.u32 %v850, 4294901760
  %1276 = vmatpush1.msra.mxu0 %v1275
  %1277 = vmatprep.subr.mxu0 0.0
  %v1278 = vand.u32 %v849, 4294901760
  %1279 = vmatpush1.msra.mxu0 %v1278
  %1280 = vmatprep.subr.mxu0 0.0
  %1281 = vmatpush2.msra.mxu0 0.0
  %1282 = vmatprep.subr.mxu0 0.0
  %1283 = vmatpush2.msra.mxu0 0.0
  %1284 = vmatprep.subr.mxu0 0.0
  %1285 = vmatpush2.msra.mxu0 0.0
  %1286 = vmatprep.subr.mxu0 0.0
  %1287 = vmatpush2.msra.mxu0 0.0
  %1288 = vmatprep.subr.mxu0 0.0
  %1289 = vmatpush2.msra.mxu0 0.0
  %1290 = vmatprep.subr.mxu0 0.0
  %1291 = vmatpush2.msra.mxu0 0.0
  %1292 = vmatprep.subr.mxu0 0.0
  %1293 = vmatpush2.msra.mxu0 0.0
  %1294 = vmatprep.subr.mxu0 0.0
  %1295 = vmatpush2.msra.mxu0 0.0
  %1296 = vmatprep.subr.mxu0 0.0
  %1297 = vmatpush2.msra.mxu0 0.0
  %1298 = vmatprep.subr.mxu0 0.0
  %1299 = vmatpush2.msra.mxu0 0.0
  %1300 = vmatprep.subr.mxu0 0.0
  %1301 = vmatpush2.msra.mxu0 0.0
  %1302 = vmatprep.subr.mxu0 0.0
  %1303 = vmatpush2.msra.mxu0 0.0
  %1304 = vmatprep.subr.mxu0 0.0
  %1305 = vmatpush2.msra.mxu0 0.0
  %1306 = vmatprep.subr.mxu0 0.0
  %1307 = vmatpush2.msra.mxu0 0.0
  %1308 = vmatprep.subr.mxu0 0.0
  %1309 = vmatpush2.msra.mxu0 0.0
  %1310 = vmatprep.subr.mxu0 0.0
  %1311 = vmatpush2.msra.mxu0 0.0
  %1312 = vmatprep.mubr.f32.mxu0 0.0
  %v1313 = vand.u32 %v66, 4294901760
  %v1314 = vsub.f32 %v66, %v1313
  %v1315 = vand.u32 %v1314, 4294901760
  %1316 = vmatmul.mubr.f32.gmra.mxu0 %v1315
  %v1317 = vpop.f32.mrf.mxu0
  %v1318 = vadd.f32 %v1194, %v1317
  %v1319 = vpop.f32.mrf.mxu0
  %1320 = vmatprep.mubr.f32.mxu0 0.0
  %v1321 = vand.u32 %v69, 4294901760
  %v1322 = vsub.f32 %v69, %v1321
  %v1323 = vand.u32 %v1322, 4294901760
  %1324 = vmatmul.mubr.f32.gmra.mxu0 %v1323
  %v1325 = vpop.f32.mrf.mxu0
  %v1326 = vadd.f32 %v1201, %v1325
  %v1327 = vpop.f32.mrf.mxu0
  %1328 = vmatprep.mubr.f32.mxu0 0.0
  %v1329 = vand.u32 %v72, 4294901760
  %v1330 = vsub.f32 %v72, %v1329
  %v1331 = vand.u32 %v1330, 4294901760
  %1332 = vmatmul.mubr.f32.gmra.mxu0 %v1331
  %v1333 = vpop.f32.mrf.mxu0
  %v1334 = vadd.f32 %v1208, %v1333
  %v1335 = vpop.f32.mrf.mxu0
  %1336 = vmatprep.mubr.f32.mxu0 0.0
  %v1337 = vand.u32 %v75, 4294901760
  %v1338 = vsub.f32 %v75, %v1337
  %v1339 = vand.u32 %v1338, 4294901760
  %1340 = vmatmul.mubr.f32.gmra.mxu0 %v1339
  %v1341 = vpop.f32.mrf.mxu0
  %v1342 = vadd.f32 %v1215, %v1341
  %v1343 = vpop.f32.mrf.mxu0
  %1344 = vmatprep.mubr.f32.mxu0 0.0
  %v1345 = vand.u32 %v78, 4294901760
  %v1346 = vsub.f32 %v78, %v1345
  %v1347 = vand.u32 %v1346, 4294901760
  %1348 = vmatmul.mubr.f32.gmra.mxu0 %v1347
  %v1349 = vpop.f32.mrf.mxu0
  %v1350 = vadd.f32 %v1222, %v1349
  %v1351 = vpop.f32.mrf.mxu0
  %1352 = vmatprep.mubr.f32.mxu0 0.0
  %v1353 = vand.u32 %v81, 4294901760
  %v1354 = vsub.f32 %v81, %v1353
  %v1355 = vand.u32 %v1354, 4294901760
  %1356 = vmatmul.mubr.f32.gmra.mxu0 %v1355
  %v1357 = vpop.f32.mrf.mxu0
  %v1358 = vadd.f32 %v1229, %v1357
  %v1359 = vpop.f32.mrf.mxu0
  %1360 = vmatprep.mubr.f32.mxu0 0.0
  %v1361 = vand.u32 %v84, 4294901760
  %v1362 = vsub.f32 %v84, %v1361
  %v1363 = vand.u32 %v1362, 4294901760
  %1364 = vmatmul.mubr.f32.gmra.mxu0 %v1363
  %v1365 = vpop.f32.mrf.mxu0
  %v1366 = vadd.f32 %v1236, %v1365
  %v1367 = vpop.f32.mrf.mxu0
  %1368 = vmatprep.mubr.f32.mxu0 0.0
  %v1369 = vand.u32 %v87, 4294901760
  %v1370 = vsub.f32 %v87, %v1369
  %v1371 = vand.u32 %v1370, 4294901760
  %1372 = vmatmul.mubr.f32.gmra.mxu0 %v1371
  %v1373 = vpop.f32.mrf.mxu0
  %v1374 = vadd.f32 %v1243, %v1373
  %v1375 = vpop.f32.mrf.mxu0
  %1376 = vdwg.mxu0
  %1377 = vmatprep.subr.mxu0 0.0
  %1378 = vmatpush1.msra.mxu0 0.0
  %1379 = vmatprep.subr.mxu0 0.0
  %1380 = vmatpush1.msra.mxu0 0.0
  %1381 = vmatprep.subr.mxu0 0.0
  %1382 = vmatpush1.msra.mxu0 0.0
  %1383 = vmatprep.subr.mxu0 0.0
  %1384 = vmatpush1.msra.mxu0 0.0
  %1385 = vmatprep.subr.mxu0 0.0
  %1386 = vmatpush1.msra.mxu0 0.0
  %1387 = vmatprep.subr.mxu0 0.0
  %1388 = vmatpush1.msra.mxu0 0.0
  %1389 = vmatprep.subr.mxu0 0.0
  %1390 = vmatpush1.msra.mxu0 0.0
  %1391 = vmatprep.subr.mxu0 0.0
  %1392 = vmatpush1.msra.mxu0 0.0
  %1393 = vmatprep.subr.mxu0 0.0
  %1394 = vmatpush1.msra.mxu0 0.0
  %1395 = vmatprep.subr.mxu0 0.0
  %1396 = vmatpush1.msra.mxu0 0.0
  %1397 = vmatprep.subr.mxu0 0.0
  %1398 = vmatpush1.msra.mxu0 0.0
  %1399 = vmatprep.subr.mxu0 0.0
  %1400 = vmatpush1.msra.mxu0 0.0
  %1401 = vmatprep.subr.mxu0 0.0
  %1402 = vmatpush1.msra.mxu0 0.0
  %1403 = vmatprep.subr.mxu0 0.0
  %1404 = vmatpush1.msra.mxu0 0.0
  %1405 = vmatprep.subr.mxu0 0.0
  %v1406 = vand.u32 %v850, 4294901760
  %v1407 = vsub.f32 %v850, %v1406
  %v1408 = vand.u32 %v1407, 4294901760
  %1409 = vmatpush1.msra.mxu0 %v1408
  %1410 = vmatprep.subr.mxu0 0.0
  %v1411 = vand.u32 %v849, 4294901760
  %v1412 = vsub.f32 %v849, %v1411
  %v1413 = vand.u32 %v1412, 4294901760
  %1414 = vmatpush1.msra.mxu0 %v1413
  %1415 = vmatprep.subr.mxu0 0.0
  %1416 = vmatpush2.msra.mxu0 0.0
  %1417 = vmatprep.subr.mxu0 0.0
  %1418 = vmatpush2.msra.mxu0 0.0
  %1419 = vmatprep.subr.mxu0 0.0
  %1420 = vmatpush2.msra.mxu0 0.0
  %1421 = vmatprep.subr.mxu0 0.0
  %1422 = vmatpush2.msra.mxu0 0.0
  %1423 = vmatprep.subr.mxu0 0.0
  %1424 = vmatpush2.msra.mxu0 0.0
  %1425 = vmatprep.subr.mxu0 0.0
  %1426 = vmatpush2.msra.mxu0 0.0
  %1427 = vmatprep.subr.mxu0 0.0
  %1428 = vmatpush2.msra.mxu0 0.0
  %1429 = vmatprep.subr.mxu0 0.0
  %1430 = vmatpush2.msra.mxu0 0.0
  %1431 = vmatprep.subr.mxu0 0.0
  %1432 = vmatpush2.msra.mxu0 0.0
  %1433 = vmatprep.subr.mxu0 0.0
  %1434 = vmatpush2.msra.mxu0 0.0
  %1435 = vmatprep.subr.mxu0 0.0
  %1436 = vmatpush2.msra.mxu0 0.0
  %1437 = vmatprep.subr.mxu0 0.0
  %1438 = vmatpush2.msra.mxu0 0.0
  %1439 = vmatprep.subr.mxu0 0.0
  %1440 = vmatpush2.msra.mxu0 0.0
  %1441 = vmatprep.subr.mxu0 0.0
  %1442 = vmatpush2.msra.mxu0 0.0
  %1443 = vmatprep.subr.mxu0 0.0
  %1444 = vmatpush2.msra.mxu0 0.0
  %1445 = vmatprep.subr.mxu0 0.0
  %1446 = vmatpush2.msra.mxu0 0.0
  %1447 = vmatprep.mubr.f32.mxu0 0.0
  %v1448 = vand.u32 %v66, 4294901760
  %1449 = vmatmul.mubr.f32.gmra.mxu0 %v1448
  %v1450 = vpop.f32.mrf.mxu0
  %v1451 = vadd.f32 %v1318, %v1450
  %v1452 = vpop.f32.mrf.mxu0
  %1453 = vmatprep.mubr.f32.mxu0 0.0
  %v1454 = vand.u32 %v69, 4294901760
  %1455 = vmatmul.mubr.f32.gmra.mxu0 %v1454
  %v1456 = vpop.f32.mrf.mxu0
  %v1457 = vadd.f32 %v1326, %v1456
  %v1458 = vpop.f32.mrf.mxu0
  %1459 = vmatprep.mubr.f32.mxu0 0.0
  %v1460 = vand.u32 %v72, 4294901760
  %1461 = vmatmul.mubr.f32.gmra.mxu0 %v1460
  %v1462 = vpop.f32.mrf.mxu0
  %v1463 = vadd.f32 %v1334, %v1462
  %v1464 = vpop.f32.mrf.mxu0
  %1465 = vmatprep.mubr.f32.mxu0 0.0
  %v1466 = vand.u32 %v75, 4294901760
  %1467 = vmatmul.mubr.f32.gmra.mxu0 %v1466
  %v1468 = vpop.f32.mrf.mxu0
  %v1469 = vadd.f32 %v1342, %v1468
  %v1470 = vpop.f32.mrf.mxu0
  %1471 = vmatprep.mubr.f32.mxu0 0.0
  %v1472 = vand.u32 %v78, 4294901760
  %1473 = vmatmul.mubr.f32.gmra.mxu0 %v1472
  %v1474 = vpop.f32.mrf.mxu0
  %v1475 = vadd.f32 %v1350, %v1474
  %v1476 = vpop.f32.mrf.mxu0
  %1477 = vmatprep.mubr.f32.mxu0 0.0
  %v1478 = vand.u32 %v81, 4294901760
  %1479 = vmatmul.mubr.f32.gmra.mxu0 %v1478
  %v1480 = vpop.f32.mrf.mxu0
  %v1481 = vadd.f32 %v1358, %v1480
  %v1482 = vpop.f32.mrf.mxu0
  %1483 = vmatprep.mubr.f32.mxu0 0.0
  %v1484 = vand.u32 %v84, 4294901760
  %1485 = vmatmul.mubr.f32.gmra.mxu0 %v1484
  %v1486 = vpop.f32.mrf.mxu0
  %v1487 = vadd.f32 %v1366, %v1486
  %v1488 = vpop.f32.mrf.mxu0
  %1489 = vmatprep.mubr.f32.mxu0 0.0
  %v1490 = vand.u32 %v87, 4294901760
  %1491 = vmatmul.mubr.f32.gmra.mxu0 %v1490
  %v1492 = vpop.f32.mrf.mxu0
  %v1493 = vadd.f32 %v1374, %v1492
  %v1494 = vpop.f32.mrf.mxu0
  %1495 = vdwg.mxu0
  %1496 = vmatprep.subr.mxu0 0.0
  %1497 = vmatpush1.msra.mxu0 0.0
  %1498 = vmatprep.subr.mxu0 0.0
  %1499 = vmatpush1.msra.mxu0 0.0
  %1500 = vmatprep.subr.mxu0 0.0
  %1501 = vmatpush1.msra.mxu0 0.0
  %1502 = vmatprep.subr.mxu0 0.0
  %1503 = vmatpush1.msra.mxu0 0.0
  %1504 = vmatprep.subr.mxu0 0.0
  %1505 = vmatpush1.msra.mxu0 0.0
  %1506 = vmatprep.subr.mxu0 0.0
  %1507 = vmatpush1.msra.mxu0 0.0
  %1508 = vmatprep.subr.mxu0 0.0
  %1509 = vmatpush1.msra.mxu0 0.0
  %1510 = vmatprep.subr.mxu0 0.0
  %1511 = vmatpush1.msra.mxu0 0.0
  %1512 = vmatprep.subr.mxu0 0.0
  %1513 = vmatpush1.msra.mxu0 0.0
  %1514 = vmatprep.subr.mxu0 0.0
  %1515 = vmatpush1.msra.mxu0 0.0
  %1516 = vmatprep.subr.mxu0 0.0
  %1517 = vmatpush1.msra.mxu0 0.0
  %1518 = vmatprep.subr.mxu0 0.0
  %1519 = vmatpush1.msra.mxu0 0.0
  %1520 = vmatprep.subr.mxu0 0.0
  %1521 = vmatpush1.msra.mxu0 0.0
  %1522 = vmatprep.subr.mxu0 0.0
  %1523 = vmatpush1.msra.mxu0 0.0
  %1524 = vmatprep.subr.mxu0 0.0
  %v1525 = vand.u32 %v850, 4294901760
  %1526 = vmatpush1.msra.mxu0 %v1525
  %1527 = vmatprep.subr.mxu0 0.0
  %v1528 = vand.u32 %v849, 4294901760
  %1529 = vmatpush1.msra.mxu0 %v1528
  %1530 = vmatprep.subr.mxu0 0.0
  %1531 = vmatpush2.msra.mxu0 0.0
  %1532 = vmatprep.subr.mxu0 0.0
  %1533 = vmatpush2.msra.mxu0 0.0
  %1534 = vmatprep.subr.mxu0 0.0
  %1535 = vmatpush2.msra.mxu0 0.0
  %1536 = vmatprep.subr.mxu0 0.0
  %1537 = vmatpush2.msra.mxu0 0.0
  %1538 = vmatprep.subr.mxu0 0.0
  %1539 = vmatpush2.msra.mxu0 0.0
  %1540 = vmatprep.subr.mxu0 0.0
  %1541 = vmatpush2.msra.mxu0 0.0
  %1542 = vmatprep.subr.mxu0 0.0
  %1543 = vmatpush2.msra.mxu0 0.0
  %1544 = vmatprep.subr.mxu0 0.0
  %1545 = vmatpush2.msra.mxu0 0.0
  %1546 = vmatprep.subr.mxu0 0.0
  %1547 = vmatpush2.msra.mxu0 0.0
  %1548 = vmatprep.subr.mxu0 0.0
  %1549 = vmatpush2.msra.mxu0 0.0
  %1550 = vmatprep.subr.mxu0 0.0
  %1551 = vmatpush2.msra.mxu0 0.0
  %1552 = vmatprep.subr.mxu0 0.0
  %1553 = vmatpush2.msra.mxu0 0.0
  %1554 = vmatprep.subr.mxu0 0.0
  %1555 = vmatpush2.msra.mxu0 0.0
  %1556 = vmatprep.subr.mxu0 0.0
  %1557 = vmatpush2.msra.mxu0 0.0
  %1558 = vmatprep.subr.mxu0 0.0
  %1559 = vmatpush2.msra.mxu0 0.0
  %1560 = vmatprep.subr.mxu0 0.0
  %1561 = vmatpush2.msra.mxu0 0.0
  %1562 = vmatprep.mubr.f32.mxu0 0.0
  %v1563 = vand.u32 %v66, 4294901760
  %1564 = vmatmul.mubr.f32.gmra.mxu0 %v1563
  %v1565 = vpop.f32.mrf.mxu0
  %v1566 = vadd.f32 %v1451, %v1565
  %v1567 = vpop.f32.mrf.mxu0
  %1568 = vmatprep.mubr.f32.mxu0 0.0
  %v1569 = vand.u32 %v69, 4294901760
  %1570 = vmatmul.mubr.f32.gmra.mxu0 %v1569
  %v1571 = vpop.f32.mrf.mxu0
  %v1572 = vadd.f32 %v1457, %v1571
  %v1573 = vpop.f32.mrf.mxu0
  %1574 = vmatprep.mubr.f32.mxu0 0.0
  %v1575 = vand.u32 %v72, 4294901760
  %1576 = vmatmul.mubr.f32.gmra.mxu0 %v1575
  %v1577 = vpop.f32.mrf.mxu0
  %v1578 = vadd.f32 %v1463, %v1577
  %v1579 = vpop.f32.mrf.mxu0
  %1580 = vmatprep.mubr.f32.mxu0 0.0
  %v1581 = vand.u32 %v75, 4294901760
  %1582 = vmatmul.mubr.f32.gmra.mxu0 %v1581
  %v1583 = vpop.f32.mrf.mxu0
  %v1584 = vadd.f32 %v1469, %v1583
  %v1585 = vpop.f32.mrf.mxu0
  %1586 = vmatprep.mubr.f32.mxu0 0.0
  %v1587 = vand.u32 %v78, 4294901760
  %1588 = vmatmul.mubr.f32.gmra.mxu0 %v1587
  %v1589 = vpop.f32.mrf.mxu0
  %v1590 = vadd.f32 %v1475, %v1589
  %v1591 = vpop.f32.mrf.mxu0
  %1592 = vmatprep.mubr.f32.mxu0 0.0
  %v1593 = vand.u32 %v81, 4294901760
  %1594 = vmatmul.mubr.f32.gmra.mxu0 %v1593
  %v1595 = vpop.f32.mrf.mxu0
  %v1596 = vadd.f32 %v1481, %v1595
  %v1597 = vpop.f32.mrf.mxu0
  %1598 = vmatprep.mubr.f32.mxu0 0.0
  %v1599 = vand.u32 %v84, 4294901760
  %1600 = vmatmul.mubr.f32.gmra.mxu0 %v1599
  %v1601 = vpop.f32.mrf.mxu0
  %v1602 = vadd.f32 %v1487, %v1601
  %v1603 = vpop.f32.mrf.mxu0
  %1604 = vmatprep.mubr.f32.mxu0 0.0
  %v1605 = vand.u32 %v87, 4294901760
  %1606 = vmatmul.mubr.f32.gmra.mxu0 %v1605
  %v1607 = vpop.f32.mrf.mxu0
  %v1608 = vadd.f32 %v1493, %v1607
  %v1609 = vpop.f32.mrf.mxu0
  %1610 = vdwg.mxu0
  %v1611 = vmax.f32 %v804, %v1566
  %v1612 = vmax.f32 %v810, %v1572
  %v1613 = vmax.f32 %v816, %v1578
  %v1614 = vmax.f32 %v822, %v1584
  %v1615 = vmax.f32 %v828, %v1590
  %v1616 = vmax.f32 %v834, %v1596
  %v1617 = vmax.f32 %v840, %v1602
  %v1618 = vmax.f32 %v846, %v1608
  %vm1619 = vcmask 64512
  %1620 = vst.msk [vmem:[%s3] sm:$0xff] %vm1619, %v1611
  %1621 = vst.msk [vmem:[%s3 + $0x8] sm:$0xff] %vm1619, %v1612
  %1622 = vst.msk [vmem:[%s3 + $0x10] sm:$0xff] %vm1619, %v1613
  %1623 = vst.msk [vmem:[%s3 + $0x18] sm:$0xff] %vm1619, %v1614
  %1624 = vst.msk [vmem:[%s3 + $0x20] sm:$0xff] %vm1619, %v1615
  %1625 = vst.msk [vmem:[%s3 + $0x28] sm:$0xff] %vm1619, %v1616
  %1626 = vst.msk [vmem:[%s3 + $0x30] sm:$0xff] %vm1619, %v1617
  %1627 = vst.msk [vmem:[%s3 + $0x38] sm:$0xff] %vm1619, %v1618
  // Predicated region
  $region14: #{tpu_custom_call.1} parent=0 // pred_check
    _
  $region15: #{tpu_custom_call.1} parent=0 // pred_check_branch
    %1629 = sbr.rel (0) target = $region17
  $region16: #{tpu_custom_call.1} parent=0 // pred_region
    _
  $region17: #{tpu_custom_call.1} parent=0 // pred_fallthru
    _
  // Predicated region
  $region18: #{tpu_custom_call.1} parent=0 // pred_check
    _
  $region19: #{tpu_custom_call.1} parent=0 // pred_check_branch
    %1631 = sbr.rel (0) target = $region21
  $region20: #{tpu_custom_call.1} parent=0 // pred_region
    _
  $region21: #{tpu_custom_call.1} parent=0 // pred_fallthru
    _

</llo_original>
